<compile_context>
chip_gen: v5e
topology: v5e:2x2
jax: 0.10.0
libtpu: 0.0.40
codegen_flags: <defaults>
</compile_context>

<pallas_src>
import numpy as np
import jax
import jax.numpy as jnp
from jax.experimental import pallas as pl
from jax.experimental.pallas import tpu as pltpu

NUM_JOINTS = 16
NUM_BONES = 15
NOISE_CH = 48
LINEAR_SIZE = 256
NUM_STAGE = 2
BLR_TANH_LIMIT = 0.2
LRELU_SLOPE = 0.01
BN_EPS = 1e-5

COORD_DIM = 3 * NUM_JOINTS                 # 48 joint-major coordinates
SLAB_DIM = 2 * COORD_DIM + NOISE_CH        # 48 + 48 + 48 = 144 input lanes
BONE_PAD = 16                              # 15 bones + 1 (root / pad) lane
BLR_LANES = 16                             # 9 blr values + pad
POSE_LANES = COORD_DIM                     # 48
OUT_PAD = 128                              # lane-dense output slab width

# H36M-style 16-joint skeleton used by PoseAug:
#  0 Hip, 1 RHip, 2 RKnee, 3 RFoot, 4 LHip, 5 LKnee, 6 LFoot, 7 Spine,
#  8 Thorax, 9 Head, 10 LShoulder, 11 LElbow, 12 LWrist,
#  13 RShoulder, 14 RElbow, 15 RWrist
PARENTS = [-1, 0, 1, 2, 0, 4, 5, 0, 7, 8, 8, 10, 11, 8, 13, 14]
# 15 bones -> 9 symmetric bone-length classes (left/right limbs share a class)
BONE_CLASS = [0, 1, 2, 0, 1, 2, 3, 4, 5, 6, 7, 8, 6, 7, 8]
# tmp_mask from BLGenerator.forward
BLR_MASK = np.array([[1, 1, 1, 1, 0, 1, 1, 1, 1]], dtype=np.float32)


def _round_up(x, m):
    return (x + m - 1) // m * m


# --------------------------------------------------------------------------
# Reference skeleton constants (used only by the pure-JAX reference).
# --------------------------------------------------------------------------
def make_reference_constants():
    C = np.zeros((NUM_JOINTS, NUM_BONES), np.float32)       # joints -> bone vecs
    for j in range(1, NUM_JOINTS):
        C[j, j - 1] = 1.0
        C[PARENTS[j], j - 1] = -1.0
    Cinv = np.zeros((NUM_BONES, NUM_JOINTS), np.float32)    # bone vecs -> joints
    for j in range(1, NUM_JOINTS):
        p = j
        while p != 0:
            Cinv[p - 1, j] = 1.0
            p = PARENTS[p]
    T = np.zeros((9, NUM_BONES), np.float32)                 # blr9 -> blr15
    for b, cls in enumerate(BONE_CLASS):
        T[cls, b] = 1.0
    return (jnp.asarray(C), jnp.asarray(Cinv), jnp.asarray(T),
            jnp.asarray(BLR_MASK))


def init_params(key):
    """Deterministic synthetic parameters matching the module's shapes."""
    in_dim = COORD_DIM + NUM_BONES + NOISE_CH     # 111
    ks = jax.random.split(key, 10)

    def dense(k, fan_in, fan_out):
        return 0.05 * jax.random.normal(k, (fan_in, fan_out), jnp.float32)

    n_bn = 1 + 2 * NUM_STAGE  # batch_norm_BL + 2 BN per Linear stage
    gamma = 1.0 + 0.1 * jax.random.normal(ks[2], (n_bn, LINEAR_SIZE), jnp.float32)
    beta = 0.1 * jax.random.normal(ks[3], (n_bn, LINEAR_SIZE), jnp.float32)
    rmean = 0.1 * jax.random.normal(ks[4], (n_bn, LINEAR_SIZE), jnp.float32)
    rvar = 0.5 + jax.random.uniform(ks[5], (n_bn, LINEAR_SIZE), jnp.float32)
    bn_scale = gamma / jnp.sqrt(rvar + BN_EPS)
    bn_shift = beta - rmean * bn_scale

    return {
        "W1": dense(ks[0], in_dim, LINEAR_SIZE),
        "b1": 0.01 * jax.random.normal(ks[1], (LINEAR_SIZE,), jnp.float32),
        "bn_scale": bn_scale,
        "bn_shift": bn_shift,
        "W_st": 0.05 * jax.random.normal(
            ks[6], (2 * NUM_STAGE, LINEAR_SIZE, LINEAR_SIZE), jnp.float32),
        "b_st": 0.01 * jax.random.normal(
            ks[7], (2 * NUM_STAGE, LINEAR_SIZE), jnp.float32),
        "W2": dense(ks[8], LINEAR_SIZE, 9),
        "b2": 0.01 * jax.random.normal(ks[9], (9,), jnp.float32),
    }


# --------------------------------------------------------------------------
# One-time parameter / constant preparation (all layout + BN folding here).
# --------------------------------------------------------------------------
def prepare_inference_params(params):
    s = params["bn_scale"]                 # (5, 256)
    t = params["bn_shift"]                 # (5, 256)
    W1 = params["W1"]                      # (111, 256): [x(48) | bl(15) | noise(48)]

    # First layer, split into a slab dot (x + zeroed augx + noise) and a
    # bone-length dot; BN scale folded into columns, bias folded into shift.
    w1_slab = jnp.concatenate(
        [W1[:COORD_DIM],
         jnp.zeros((COORD_DIM, LINEAR_SIZE), jnp.float32),     # augx block unused by MLP
         W1[COORD_DIM + NUM_BONES:]], axis=0) * s[0]           # (144, 256)
    w1_bl = jnp.concatenate(
        [W1[COORD_DIM:COORD_DIM + NUM_BONES],
         jnp.zeros((BONE_PAD - NUM_BONES, LINEAR_SIZE), jnp.float32)],
        axis=0) * s[0]                                         # (16, 256)
    shift0 = (params["b1"] * s[0] + t[0]).reshape(1, LINEAR_SIZE)

    w_st = params["W_st"] * s[1:, None, :]                     # (4, 256, 256)
    shift_st = (params["b_st"] * s[1:] + t[1:])[:, None, :]    # (4, 1, 256)

    w2 = jnp.concatenate(
        [params["W2"], jnp.zeros((LINEAR_SIZE, BLR_LANES - 9), jnp.float32)],
        axis=1)                                                # (256, 16)
    b2 = jnp.concatenate(
        [params["b2"], jnp.zeros((BLR_LANES - 9,), jnp.float32)]).reshape(1, BLR_LANES)
    mask16 = jnp.concatenate(
        [jnp.asarray(BLR_MASK), jnp.zeros((1, BLR_LANES - 9), jnp.float32)], axis=1)

    # Skeleton matrices in the joint-major lane layout of the input slab.
    # cb[k]: (144, 16) slab -> per-coordinate bone vectors.
    #   k = 0..2 : x bone vectors (coordinate k)
    #   k = 3..5 : augx bone vectors (coordinate k-3); column 15 carries the
    #              augx root coordinate (for the root re-add downstream).
    cb = np.zeros((6, SLAB_DIM, BONE_PAD), np.float32)
    # t16: (16, 16) blr(9, padded) -> per-bone gain offsets (column 15 = 0).
    t16 = np.zeros((BLR_LANES, BONE_PAD), np.float32)
    for b in range(NUM_BONES):
        j, p = b + 1, PARENTS[b + 1]
        for c in range(3):
            cb[c, 3 * j + c, b] += 1.0
            cb[c, 3 * p + c, b] -= 1.0
            cb[3 + c, COORD_DIM + 3 * j + c, b] += 1.0
            cb[3 + c, COORD_DIM + 3 * p + c, b] -= 1.0
        t16[BONE_CLASS[b], b] = 1.0
    for c in range(3):
        cb[3 + c, COORD_DIM + c, NUM_BONES] = 1.0   # augx root -> "bone" 15

    # cinvj[c]: (16, 48) modified bone vectors (+root in slot 15) -> joint-major
    # pose lanes for coordinate c (root broadcast folded into row 15).
    cinvj = np.zeros((3, BONE_PAD, COORD_DIM), np.float32)
    for j in range(1, NUM_JOINTS):
        p = j
        while p != 0:
            for c in range(3):
                cinvj[c, p - 1, 3 * j + c] = 1.0
            p = PARENTS[p]
    for j in range(NUM_JOINTS):
        for c in range(3):
            cinvj[c, NUM_BONES, 3 * j + c] = 1.0

    return {
        "cb": jnp.asarray(cb),
        "cinvj": jnp.asarray(cinvj),
        "t16": jnp.asarray(t16),
        "mask": mask16,
        "w1_slab": w1_slab.astype(jnp.bfloat16),
        "w1_bl": w1_bl.astype(jnp.bfloat16),
        "shift0": shift0,
        "w_st": w_st.astype(jnp.bfloat16),
        "shift_st": shift_st,
        "w2": w2.astype(jnp.bfloat16),
        "b2": b2,
    }


# --------------------------------------------------------------------------
# Pallas kernel: one batch tile per grid step, weights resident in VMEM.
# --------------------------------------------------------------------------
def _blgen_kernel(slab_ref, cb_ref, cinvj_ref, t16_ref, mask_ref,
                  w1s_ref, w1bl_ref, shift0_ref, wst_ref, shiftst_ref,
                  w2_ref, b2_ref, out_ref):
    tn = slab_ref.shape[0]
    slab = slab_ref[...]                                    # (tn, 144) f32

    def leaky(v):                                           # slope 0.01 < 1
        return jnp.maximum(v, LRELU_SLOPE * v)

    # ---- bone vectors (x for lengths, augx + root for the output path) ------
    bv = [jnp.dot(slab, cb_ref[k], preferred_element_type=jnp.float32)
          for k in range(6)]                                # each (tn, 16)
    bl_x = jnp.sqrt(bv[0] * bv[0] + bv[1] * bv[1] + bv[2] * bv[2])

    # ---- MLP: BN scale folded into weights, bias folded into shift ----------
    h = (jnp.dot(slab.astype(jnp.bfloat16), w1s_ref[...],
                 preferred_element_type=jnp.float32)
         + jnp.dot(bl_x.astype(jnp.bfloat16), w1bl_ref[...],
                   preferred_element_type=jnp.float32)
         + shift0_ref[...])
    h = leaky(h)
    for l in range(2 * NUM_STAGE):
        h = jnp.dot(h.astype(jnp.bfloat16), wst_ref[l],
                    preferred_element_type=jnp.float32) + shiftst_ref[l]
        h = leaky(h)

    # ---- w2_BL -> mask -> tanh * blr_tanhlimit ------------------------------
    blr = jnp.dot(h.astype(jnp.bfloat16), w2_ref[...],
                  preferred_element_type=jnp.float32) + b2_ref[...]
    blr = jnp.tanh(blr * mask_ref[...]) * BLR_TANH_LIMIT    # (tn, 16), lanes 9.. = 0

    # ---- blaugment9to15 (simplified): bone' = abv*(1+blr15); root rides along
    # as "bone" 15 with gain forced to 1 (t16 column 15 is zero).
    gain = jnp.dot(blr, t16_ref[...], preferred_element_type=jnp.float32) + 1.0
    pose = (jnp.dot(bv[3] * gain, cinvj_ref[0], preferred_element_type=jnp.float32)
            + jnp.dot(bv[4] * gain, cinvj_ref[1], preferred_element_type=jnp.float32)
            + jnp.dot(bv[5] * gain, cinvj_ref[2], preferred_element_type=jnp.float32))
    # pose: (tn, 48) joint-major, root re-add already folded in.

    # ---- lane-dense 128-wide output slab: [pose(48) | blr(16) | pad(64)] ----
    out_ref[...] = jnp.concatenate(
        [pose, blr,
         jnp.zeros((tn, OUT_PAD - POSE_LANES - BLR_LANES), jnp.float32)],
        axis=-1)


def bl_generator_forward(inputs_3d, augx, noise, prepped, tile_n=1024):
    N = inputs_3d.shape[0]
    assert inputs_3d.shape == (N, NUM_JOINTS, 3)
    assert augx.shape == (N, NUM_JOINTS, 3)
    assert noise.shape == (N, NOISE_CH)

    # Lane-dense joint-major input slab (no transposes, cheap elementwise ops).
    x_centered = (inputs_3d - inputs_3d[:, :1, :]).reshape(N, COORD_DIM)
    slab = jnp.concatenate(
        [x_centered, augx.reshape(N, COORD_DIM), noise],
        axis=1).astype(jnp.float32)                          # (N, 144)

    # Batch tile: large to amortize per-step overhead; split into >=2 tiles
    # when possible so both v7x TensorCores get work; multiple of 8 sublanes.
    # (On v6e/v5e with 128 MiB VMEM, tile_n=2048-4096 with a higher
    #  vmem_limit_bytes amortizes further.)
    tn = max(8, _round_up(min(tile_n, pl.cdiv(N, 2)), 8))
    n_pad = _round_up(N, tn)
    if n_pad != N:
        slab = jnp.pad(slab, ((0, n_pad - N), (0, 0)))
    grid = (n_pad // tn,)

    def resident(arr):
        nd = arr.ndim
        return pl.BlockSpec(arr.shape, lambda i, _nd=nd: (0,) * _nd)

    const_order = ("cb", "cinvj", "t16", "mask", "w1_slab", "w1_bl", "shift0",
                   "w_st", "shift_st", "w2", "b2")
    consts = [prepped[k] for k in const_order]

    in_specs = ([pl.BlockSpec((tn, SLAB_DIM), lambda i: (i, 0))]
                + [resident(a) for a in consts])
    out_spec = pl.BlockSpec((tn, OUT_PAD), lambda i: (i, 0))

    packed = pl.pallas_call(
        _blgen_kernel,
        grid=grid,
        in_specs=in_specs,
        out_specs=out_spec,
        out_shape=jax.ShapeDtypeStruct((n_pad, OUT_PAD), jnp.float32),
        compiler_params=pltpu.CompilerParams(
            dimension_semantics=("parallel",),
            vmem_limit_bytes=32 * 1024 * 1024),
    )(slab, *consts)

    augx_bl = packed[:N, :POSE_LANES].reshape(N, NUM_JOINTS, 3)
    blr = packed[:N, POSE_LANES:POSE_LANES + 9]
    return augx_bl, blr


# --------------------------------------------------------------------------
# Pure-JAX f32 reference (mirrors the PyTorch forward) for validation.
# --------------------------------------------------------------------------
def reference_forward(inputs_3d, augx, noise, params, consts):
    C, Cinv, T, mask = consts
    N = inputs_3d.shape[0]

    def leaky(v):
        return jnp.where(v > 0, v, LRELU_SLOPE * v)

    def bn(v, i):
        return v * params["bn_scale"][i] + params["bn_shift"][i]

    x = inputs_3d - inputs_3d[:, :1, :]
    xf = x.reshape(N, -1)
    bvec = jnp.einsum("njc,jb->nbc", x, C)
    bl_x = jnp.sqrt(jnp.sum(bvec * bvec, axis=2))
    feat = jnp.concatenate([xf, bl_x, noise], axis=1)

    h = feat @ params["W1"] + params["b1"]
    h = leaky(bn(h, 0))
    for l in range(2 * NUM_STAGE):
        h = h @ params["W_st"][l] + params["b_st"][l]
        h = leaky(bn(h, l + 1))
    blr = h @ params["W2"] + params["b2"]
    blr = blr * mask
    blr = jnp.tanh(blr) * BLR_TANH_LIMIT

    abv = jnp.einsum("njc,jb->nbc", augx, C)            # (N, 15, 3)
    abl = jnp.sqrt(jnp.sum(abv * abv, axis=2, keepdims=True))
    blr15 = (blr @ T)[..., None]                        # (N, 15, 1)
    unit = abv / abl
    mod = unit * (abl * (blr15 + 1.0))
    pose = jnp.einsum("nbc,bj->njc", mod, Cinv)
    out = pose + augx[:, :1, :]
    return out, blr


if __name__ == "__main__":
    key = jax.random.PRNGKey(0)
    kp, kd = jax.random.split(key)
    params = init_params(kp)
    prepped = prepare_inference_params(params)
    ref_consts = make_reference_constants()

    # N=8: single small tile.  N=260: 2-tile grid + zero-row padding.
    for N in (8, 260):
        k1, k2, k3 = jax.random.split(jax.random.fold_in(kd, N), 3)
        inputs_3d = jax.random.normal(k1, (N, NUM_JOINTS, 3), jnp.float32)
        augx = jax.random.normal(k2, (N, NUM_JOINTS, 3), jnp.float32)
        noise = jax.random.normal(k3, (N, NOISE_CH), jnp.float32)

        augx_bl, blr = bl_generator_forward(inputs_3d, augx, noise, prepped)
        jax.block_until_ready((augx_bl, blr))

        ref_out, ref_blr = reference_forward(inputs_3d, augx, noise, params,
                                             ref_consts)
        assert augx_bl.shape == (N, NUM_JOINTS, 3) and blr.shape == (N, 9)
        assert bool(jnp.all(jnp.isfinite(augx_bl))) and bool(jnp.all(jnp.isfinite(blr)))
        assert float(jnp.max(jnp.abs(blr - ref_blr))) < 5e-2
        assert float(jnp.max(jnp.abs(augx_bl - ref_out))) < 5e-2

    print("KERNEL_OK")
</pallas_src>

<mosaic_0001>
module attributes {stable_mosaic.version = 11 : i64} {
  func.func @_blgen_kernel(%arg0: i32, %arg1: memref<8x144xf32, #tpu.memory_space<vmem>>, %arg2: memref<6x144x16xf32, #tpu.memory_space<vmem>>, %arg3: memref<3x16x48xf32, #tpu.memory_space<vmem>>, %arg4: memref<16x16xf32, #tpu.memory_space<vmem>>, %arg5: memref<1x16xf32, #tpu.memory_space<vmem>>, %arg6: memref<144x256xbf16, #tpu.memory_space<vmem>>, %arg7: memref<16x256xbf16, #tpu.memory_space<vmem>>, %arg8: memref<1x256xf32, #tpu.memory_space<vmem>>, %arg9: memref<4x256x256xbf16, #tpu.memory_space<vmem>>, %arg10: memref<4x1x256xf32, #tpu.memory_space<vmem>>, %arg11: memref<256x16xbf16, #tpu.memory_space<vmem>>, %arg12: memref<1x16xf32, #tpu.memory_space<vmem>>, %arg13: memref<8x128xf32, #tpu.memory_space<vmem>>) attributes {dimension_semantics = [#tpu.dimension_semantics<parallel>], iteration_bounds = array<i64: 1>, scalar_prefetch = 0 : i64, scratch_operands = 0 : i64, tpu.core_type = #tpu.core_type<tc>, window_params = [{transform_indices = @transform_0, window_bounds = array<i64: 8, 144>}, {pipeline_mode = #tpu.pipeline_mode<synchronous>, transform_indices = @transform_1, window_bounds = array<i64: 6, 144, 16>}, {pipeline_mode = #tpu.pipeline_mode<synchronous>, transform_indices = @transform_2, window_bounds = array<i64: 3, 16, 48>}, {pipeline_mode = #tpu.pipeline_mode<synchronous>, transform_indices = @transform_3, window_bounds = array<i64: 16, 16>}, {pipeline_mode = #tpu.pipeline_mode<synchronous>, transform_indices = @transform_4, window_bounds = array<i64: 1, 16>}, {pipeline_mode = #tpu.pipeline_mode<synchronous>, transform_indices = @transform_5, window_bounds = array<i64: 144, 256>}, {pipeline_mode = #tpu.pipeline_mode<synchronous>, transform_indices = @transform_6, window_bounds = array<i64: 16, 256>}, {pipeline_mode = #tpu.pipeline_mode<synchronous>, transform_indices = @transform_7, window_bounds = array<i64: 1, 256>}, {pipeline_mode = #tpu.pipeline_mode<synchronous>, transform_indices = @transform_8, window_bounds = array<i64: 4, 256, 256>}, {pipeline_mode = #tpu.pipeline_mode<synchronous>, transform_indices = @transform_9, window_bounds = array<i64: 4, 1, 256>}, {pipeline_mode = #tpu.pipeline_mode<synchronous>, transform_indices = @transform_10, window_bounds = array<i64: 256, 16>}, {pipeline_mode = #tpu.pipeline_mode<synchronous>, transform_indices = @transform_11, window_bounds = array<i64: 1, 16>}, {transform_indices = @transform_12, window_bounds = array<i64: 8, 128>}]} {
    %c0 = arith.constant 0 : index
    %c0_0 = arith.constant 0 : index
    %0 = vector.load %arg1[%c0, %c0_0] : memref<8x144xf32, #tpu.memory_space<vmem>>, vector<8x144xf32>
    %c0_1 = arith.constant 0 : index
    %c0_2 = arith.constant 0 : index
    %c0_3 = arith.constant 0 : index
    %1 = vector.load %arg2[%c0_1, %c0_2, %c0_3] : memref<6x144x16xf32, #tpu.memory_space<vmem>>, vector<1x144x16xf32>
    %2 = vector.shape_cast %1 : vector<1x144x16xf32> to vector<144x16xf32>
    %cst = arith.constant dense<0.000000e+00> : vector<8x16xf32>
    %3 = tpu.matmul %0, %2, %cst {dimension_numbers = #tpu.dot_dimension_numbers<[1], [0], [0], [1], [0, 0, 1, 1], [], []>} : vector<8x144xf32>, vector<144x16xf32>, vector<8x16xf32> -> vector<8x16xf32>
    %c1 = arith.constant 1 : index
    %c0_4 = arith.constant 0 : index
    %c0_5 = arith.constant 0 : index
    %4 = vector.load %arg2[%c1, %c0_4, %c0_5] : memref<6x144x16xf32, #tpu.memory_space<vmem>>, vector<1x144x16xf32>
    %5 = vector.shape_cast %4 : vector<1x144x16xf32> to vector<144x16xf32>
    %cst_6 = arith.constant dense<0.000000e+00> : vector<8x16xf32>
    %6 = tpu.matmul %0, %5, %cst_6 {dimension_numbers = #tpu.dot_dimension_numbers<[1], [0], [0], [1], [0, 0, 1, 1], [], []>} : vector<8x144xf32>, vector<144x16xf32>, vector<8x16xf32> -> vector<8x16xf32>
    %c2 = arith.constant 2 : index
    %c0_7 = arith.constant 0 : index
    %c0_8 = arith.constant 0 : index
    %7 = vector.load %arg2[%c2, %c0_7, %c0_8] : memref<6x144x16xf32, #tpu.memory_space<vmem>>, vector<1x144x16xf32>
    %8 = vector.shape_cast %7 : vector<1x144x16xf32> to vector<144x16xf32>
    %cst_9 = arith.constant dense<0.000000e+00> : vector<8x16xf32>
    %9 = tpu.matmul %0, %8, %cst_9 {dimension_numbers = #tpu.dot_dimension_numbers<[1], [0], [0], [1], [0, 0, 1, 1], [], []>} : vector<8x144xf32>, vector<144x16xf32>, vector<8x16xf32> -> vector<8x16xf32>
    %c3 = arith.constant 3 : index
    %c0_10 = arith.constant 0 : index
    %c0_11 = arith.constant 0 : index
    %10 = vector.load %arg2[%c3, %c0_10, %c0_11] : memref<6x144x16xf32, #tpu.memory_space<vmem>>, vector<1x144x16xf32>
    %11 = vector.shape_cast %10 : vector<1x144x16xf32> to vector<144x16xf32>
    %cst_12 = arith.constant dense<0.000000e+00> : vector<8x16xf32>
    %12 = tpu.matmul %0, %11, %cst_12 {dimension_numbers = #tpu.dot_dimension_numbers<[1], [0], [0], [1], [0, 0, 1, 1], [], []>} : vector<8x144xf32>, vector<144x16xf32>, vector<8x16xf32> -> vector<8x16xf32>
    %c4 = arith.constant 4 : index
    %c0_13 = arith.constant 0 : index
    %c0_14 = arith.constant 0 : index
    %13 = vector.load %arg2[%c4, %c0_13, %c0_14] : memref<6x144x16xf32, #tpu.memory_space<vmem>>, vector<1x144x16xf32>
    %14 = vector.shape_cast %13 : vector<1x144x16xf32> to vector<144x16xf32>
    %cst_15 = arith.constant dense<0.000000e+00> : vector<8x16xf32>
    %15 = tpu.matmul %0, %14, %cst_15 {dimension_numbers = #tpu.dot_dimension_numbers<[1], [0], [0], [1], [0, 0, 1, 1], [], []>} : vector<8x144xf32>, vector<144x16xf32>, vector<8x16xf32> -> vector<8x16xf32>
    %c5 = arith.constant 5 : index
    %c0_16 = arith.constant 0 : index
    %c0_17 = arith.constant 0 : index
    %16 = vector.load %arg2[%c5, %c0_16, %c0_17] : memref<6x144x16xf32, #tpu.memory_space<vmem>>, vector<1x144x16xf32>
    %17 = vector.shape_cast %16 : vector<1x144x16xf32> to vector<144x16xf32>
    %cst_18 = arith.constant dense<0.000000e+00> : vector<8x16xf32>
    %18 = tpu.matmul %0, %17, %cst_18 {dimension_numbers = #tpu.dot_dimension_numbers<[1], [0], [0], [1], [0, 0, 1, 1], [], []>} : vector<8x144xf32>, vector<144x16xf32>, vector<8x16xf32> -> vector<8x16xf32>
    %19 = arith.mulf %3, %3 : vector<8x16xf32>
    %20 = arith.mulf %6, %6 : vector<8x16xf32>
    %21 = arith.addf %19, %20 : vector<8x16xf32>
    %22 = arith.mulf %9, %9 : vector<8x16xf32>
    %23 = arith.addf %21, %22 : vector<8x16xf32>
    %24 = math.sqrt %23 : vector<8x16xf32>
    %25 = arith.truncf %0 : vector<8x144xf32> to vector<8x144xbf16>
    %c0_19 = arith.constant 0 : index
    %c0_20 = arith.constant 0 : index
    %26 = vector.load %arg6[%c0_19, %c0_20] : memref<144x256xbf16, #tpu.memory_space<vmem>>, vector<144x256xbf16>
    %cst_21 = arith.constant dense<0.000000e+00> : vector<8x256xf32>
    %27 = tpu.matmul %25, %26, %cst_21 {dimension_numbers = #tpu.dot_dimension_numbers<[1], [0], [0], [1], [0, 0, 1, 1], [], []>} : vector<8x144xbf16>, vector<144x256xbf16>, vector<8x256xf32> -> vector<8x256xf32>
    %28 = arith.truncf %24 : vector<8x16xf32> to vector<8x16xbf16>
    %c0_22 = arith.constant 0 : index
    %c0_23 = arith.constant 0 : index
    %29 = vector.load %arg7[%c0_22, %c0_23] : memref<16x256xbf16, #tpu.memory_space<vmem>>, vector<16x256xbf16>
    %cst_24 = arith.constant dense<0.000000e+00> : vector<8x256xf32>
    %30 = tpu.matmul %28, %29, %cst_24 {dimension_numbers = #tpu.dot_dimension_numbers<[1], [0], [0], [1], [0, 0, 1, 1], [], []>} : vector<8x16xbf16>, vector<16x256xbf16>, vector<8x256xf32> -> vector<8x256xf32>
    %31 = arith.addf %27, %30 : vector<8x256xf32>
    %c0_25 = arith.constant 0 : index
    %c0_26 = arith.constant 0 : index
    %32 = vector.load %arg8[%c0_25, %c0_26] : memref<1x256xf32, #tpu.memory_space<vmem>>, vector<1x256xf32>
    %33 = vector.broadcast %32 : vector<1x256xf32> to vector<8x256xf32>
    %34 = arith.addf %31, %33 : vector<8x256xf32>
    %cst_27 = arith.constant 0.00999999977 : f32
    %35 = vector.broadcast %cst_27 : f32 to vector<8x256xf32>
    %36 = arith.mulf %35, %34 : vector<8x256xf32>
    %37 = arith.maximumf %34, %36 : vector<8x256xf32>
    %38 = arith.truncf %37 : vector<8x256xf32> to vector<8x256xbf16>
    %c0_28 = arith.constant 0 : index
    %c0_29 = arith.constant 0 : index
    %c0_30 = arith.constant 0 : index
    %39 = vector.load %arg9[%c0_28, %c0_29, %c0_30] : memref<4x256x256xbf16, #tpu.memory_space<vmem>>, vector<1x256x256xbf16>
    %40 = vector.shape_cast %39 : vector<1x256x256xbf16> to vector<256x256xbf16>
    %cst_31 = arith.constant dense<0.000000e+00> : vector<8x256xf32>
    %41 = tpu.matmul %38, %40, %cst_31 {dimension_numbers = #tpu.dot_dimension_numbers<[1], [0], [0], [1], [0, 0, 1, 1], [], []>} : vector<8x256xbf16>, vector<256x256xbf16>, vector<8x256xf32> -> vector<8x256xf32>
    %c0_32 = arith.constant 0 : index
    %c0_33 = arith.constant 0 : index
    %c0_34 = arith.constant 0 : index
    %42 = vector.load %arg10[%c0_32, %c0_33, %c0_34] : memref<4x1x256xf32, #tpu.memory_space<vmem>>, vector<1x1x256xf32>
    %43 = vector.shape_cast %42 : vector<1x1x256xf32> to vector<1x256xf32>
    %44 = vector.broadcast %43 : vector<1x256xf32> to vector<8x256xf32>
    %45 = arith.addf %41, %44 : vector<8x256xf32>
    %cst_35 = arith.constant 0.00999999977 : f32
    %46 = vector.broadcast %cst_35 : f32 to vector<8x256xf32>
    %47 = arith.mulf %46, %45 : vector<8x256xf32>
    %48 = arith.maximumf %45, %47 : vector<8x256xf32>
    %49 = arith.truncf %48 : vector<8x256xf32> to vector<8x256xbf16>
    %c1_36 = arith.constant 1 : index
    %c0_37 = arith.constant 0 : index
    %c0_38 = arith.constant 0 : index
    %50 = vector.load %arg9[%c1_36, %c0_37, %c0_38] : memref<4x256x256xbf16, #tpu.memory_space<vmem>>, vector<1x256x256xbf16>
    %51 = vector.shape_cast %50 : vector<1x256x256xbf16> to vector<256x256xbf16>
    %cst_39 = arith.constant dense<0.000000e+00> : vector<8x256xf32>
    %52 = tpu.matmul %49, %51, %cst_39 {dimension_numbers = #tpu.dot_dimension_numbers<[1], [0], [0], [1], [0, 0, 1, 1], [], []>} : vector<8x256xbf16>, vector<256x256xbf16>, vector<8x256xf32> -> vector<8x256xf32>
    %c1_40 = arith.constant 1 : index
    %c0_41 = arith.constant 0 : index
    %c0_42 = arith.constant 0 : index
    %53 = vector.load %arg10[%c1_40, %c0_41, %c0_42] : memref<4x1x256xf32, #tpu.memory_space<vmem>>, vector<1x1x256xf32>
    %54 = vector.shape_cast %53 : vector<1x1x256xf32> to vector<1x256xf32>
    %55 = vector.broadcast %54 : vector<1x256xf32> to vector<8x256xf32>
    %56 = arith.addf %52, %55 : vector<8x256xf32>
    %cst_43 = arith.constant 0.00999999977 : f32
    %57 = vector.broadcast %cst_43 : f32 to vector<8x256xf32>
    %58 = arith.mulf %57, %56 : vector<8x256xf32>
    %59 = arith.maximumf %56, %58 : vector<8x256xf32>
    %60 = arith.truncf %59 : vector<8x256xf32> to vector<8x256xbf16>
    %c2_44 = arith.constant 2 : index
    %c0_45 = arith.constant 0 : index
    %c0_46 = arith.constant 0 : index
    %61 = vector.load %arg9[%c2_44, %c0_45, %c0_46] : memref<4x256x256xbf16, #tpu.memory_space<vmem>>, vector<1x256x256xbf16>
    %62 = vector.shape_cast %61 : vector<1x256x256xbf16> to vector<256x256xbf16>
    %cst_47 = arith.constant dense<0.000000e+00> : vector<8x256xf32>
    %63 = tpu.matmul %60, %62, %cst_47 {dimension_numbers = #tpu.dot_dimension_numbers<[1], [0], [0], [1], [0, 0, 1, 1], [], []>} : vector<8x256xbf16>, vector<256x256xbf16>, vector<8x256xf32> -> vector<8x256xf32>
    %c2_48 = arith.constant 2 : index
    %c0_49 = arith.constant 0 : index
    %c0_50 = arith.constant 0 : index
    %64 = vector.load %arg10[%c2_48, %c0_49, %c0_50] : memref<4x1x256xf32, #tpu.memory_space<vmem>>, vector<1x1x256xf32>
    %65 = vector.shape_cast %64 : vector<1x1x256xf32> to vector<1x256xf32>
    %66 = vector.broadcast %65 : vector<1x256xf32> to vector<8x256xf32>
    %67 = arith.addf %63, %66 : vector<8x256xf32>
    %cst_51 = arith.constant 0.00999999977 : f32
    %68 = vector.broadcast %cst_51 : f32 to vector<8x256xf32>
    %69 = arith.mulf %68, %67 : vector<8x256xf32>
    %70 = arith.maximumf %67, %69 : vector<8x256xf32>
    %71 = arith.truncf %70 : vector<8x256xf32> to vector<8x256xbf16>
    %c3_52 = arith.constant 3 : index
    %c0_53 = arith.constant 0 : index
    %c0_54 = arith.constant 0 : index
    %72 = vector.load %arg9[%c3_52, %c0_53, %c0_54] : memref<4x256x256xbf16, #tpu.memory_space<vmem>>, vector<1x256x256xbf16>
    %73 = vector.shape_cast %72 : vector<1x256x256xbf16> to vector<256x256xbf16>
    %cst_55 = arith.constant dense<0.000000e+00> : vector<8x256xf32>
    %74 = tpu.matmul %71, %73, %cst_55 {dimension_numbers = #tpu.dot_dimension_numbers<[1], [0], [0], [1], [0, 0, 1, 1], [], []>} : vector<8x256xbf16>, vector<256x256xbf16>, vector<8x256xf32> -> vector<8x256xf32>
    %c3_56 = arith.constant 3 : index
    %c0_57 = arith.constant 0 : index
    %c0_58 = arith.constant 0 : index
    %75 = vector.load %arg10[%c3_56, %c0_57, %c0_58] : memref<4x1x256xf32, #tpu.memory_space<vmem>>, vector<1x1x256xf32>
    %76 = vector.shape_cast %75 : vector<1x1x256xf32> to vector<1x256xf32>
    %77 = vector.broadcast %76 : vector<1x256xf32> to vector<8x256xf32>
    %78 = arith.addf %74, %77 : vector<8x256xf32>
    %cst_59 = arith.constant 0.00999999977 : f32
    %79 = vector.broadcast %cst_59 : f32 to vector<8x256xf32>
    %80 = arith.mulf %79, %78 : vector<8x256xf32>
    %81 = arith.maximumf %78, %80 : vector<8x256xf32>
    %82 = arith.truncf %81 : vector<8x256xf32> to vector<8x256xbf16>
    %c0_60 = arith.constant 0 : index
    %c0_61 = arith.constant 0 : index
    %83 = vector.load %arg11[%c0_60, %c0_61] : memref<256x16xbf16, #tpu.memory_space<vmem>>, vector<256x16xbf16>
    %cst_62 = arith.constant dense<0.000000e+00> : vector<8x16xf32>
    %84 = tpu.matmul %82, %83, %cst_62 {dimension_numbers = #tpu.dot_dimension_numbers<[1], [0], [0], [1], [0, 0, 1, 1], [], []>} : vector<8x256xbf16>, vector<256x16xbf16>, vector<8x16xf32> -> vector<8x16xf32>
    %c0_63 = arith.constant 0 : index
    %c0_64 = arith.constant 0 : index
    %85 = vector.load %arg12[%c0_63, %c0_64] : memref<1x16xf32, #tpu.memory_space<vmem>>, vector<1x16xf32>
    %86 = vector.broadcast %85 : vector<1x16xf32> to vector<8x16xf32>
    %87 = arith.addf %84, %86 : vector<8x16xf32>
    %c0_65 = arith.constant 0 : index
    %c0_66 = arith.constant 0 : index
    %88 = vector.load %arg5[%c0_65, %c0_66] : memref<1x16xf32, #tpu.memory_space<vmem>>, vector<1x16xf32>
    %89 = vector.broadcast %88 : vector<1x16xf32> to vector<8x16xf32>
    %90 = arith.mulf %87, %89 : vector<8x16xf32>
    %91 = math.tanh %90 : vector<8x16xf32>
    %cst_67 = arith.constant 2.000000e-01 : f32
    %92 = vector.broadcast %cst_67 : f32 to vector<8x16xf32>
    %93 = arith.mulf %91, %92 : vector<8x16xf32>
    %c0_68 = arith.constant 0 : index
    %c0_69 = arith.constant 0 : index
    %94 = vector.load %arg4[%c0_68, %c0_69] : memref<16x16xf32, #tpu.memory_space<vmem>>, vector<16x16xf32>
    %cst_70 = arith.constant dense<0.000000e+00> : vector<8x16xf32>
    %95 = tpu.matmul %93, %94, %cst_70 {dimension_numbers = #tpu.dot_dimension_numbers<[1], [0], [0], [1], [0, 0, 1, 1], [], []>} : vector<8x16xf32>, vector<16x16xf32>, vector<8x16xf32> -> vector<8x16xf32>
    %cst_71 = arith.constant 1.000000e+00 : f32
    %96 = vector.broadcast %cst_71 : f32 to vector<8x16xf32>
    %97 = arith.addf %95, %96 : vector<8x16xf32>
    %98 = arith.mulf %12, %97 : vector<8x16xf32>
    %c0_72 = arith.constant 0 : index
    %c0_73 = arith.constant 0 : index
    %c0_74 = arith.constant 0 : index
    %99 = vector.load %arg3[%c0_72, %c0_73, %c0_74] : memref<3x16x48xf32, #tpu.memory_space<vmem>>, vector<1x16x48xf32>
    %100 = vector.shape_cast %99 : vector<1x16x48xf32> to vector<16x48xf32>
    %cst_75 = arith.constant dense<0.000000e+00> : vector<8x48xf32>
    %101 = tpu.matmul %98, %100, %cst_75 {dimension_numbers = #tpu.dot_dimension_numbers<[1], [0], [0], [1], [0, 0, 1, 1], [], []>} : vector<8x16xf32>, vector<16x48xf32>, vector<8x48xf32> -> vector<8x48xf32>
    %102 = arith.mulf %15, %97 : vector<8x16xf32>
    %c1_76 = arith.constant 1 : index
    %c0_77 = arith.constant 0 : index
    %c0_78 = arith.constant 0 : index
    %103 = vector.load %arg3[%c1_76, %c0_77, %c0_78] : memref<3x16x48xf32, #tpu.memory_space<vmem>>, vector<1x16x48xf32>
    %104 = vector.shape_cast %103 : vector<1x16x48xf32> to vector<16x48xf32>
    %cst_79 = arith.constant dense<0.000000e+00> : vector<8x48xf32>
    %105 = tpu.matmul %102, %104, %cst_79 {dimension_numbers = #tpu.dot_dimension_numbers<[1], [0], [0], [1], [0, 0, 1, 1], [], []>} : vector<8x16xf32>, vector<16x48xf32>, vector<8x48xf32> -> vector<8x48xf32>
    %106 = arith.addf %101, %105 : vector<8x48xf32>
    %107 = arith.mulf %18, %97 : vector<8x16xf32>
    %c2_80 = arith.constant 2 : index
    %c0_81 = arith.constant 0 : index
    %c0_82 = arith.constant 0 : index
    %108 = vector.load %arg3[%c2_80, %c0_81, %c0_82] : memref<3x16x48xf32, #tpu.memory_space<vmem>>, vector<1x16x48xf32>
    %109 = vector.shape_cast %108 : vector<1x16x48xf32> to vector<16x48xf32>
    %cst_83 = arith.constant dense<0.000000e+00> : vector<8x48xf32>
    %110 = tpu.matmul %107, %109, %cst_83 {dimension_numbers = #tpu.dot_dimension_numbers<[1], [0], [0], [1], [0, 0, 1, 1], [], []>} : vector<8x16xf32>, vector<16x48xf32>, vector<8x48xf32> -> vector<8x48xf32>
    %111 = arith.addf %106, %110 : vector<8x48xf32>
    %cst_84 = arith.constant 0.000000e+00 : f32
    %112 = vector.broadcast %cst_84 : f32 to vector<8x64xf32>
    %113 = tpu.concatenate %111, %93, %112 in 1 : vector<8x48xf32>, vector<8x16xf32>, vector<8x64xf32> -> vector<8x128xf32>
    %c0_85 = arith.constant 0 : index
    %c0_86 = arith.constant 0 : index
    %114 = vector.load %arg13[%c0_85, %c0_86] : memref<8x128xf32, #tpu.memory_space<vmem>>, vector<8x128xf32>
    tpu.vector_store %arg13[%c0_85, %c0_86], %113 {strides = array<i32>} : memref<8x128xf32, #tpu.memory_space<vmem>>, vector<8x128xf32>,
    return
  }
  func.func @transform_0(%arg0: i32) -> (i32, i32) {
    %c0_i32 = arith.constant 0 : i32
    %c0_i32_0 = arith.constant 0 : i32
    return %arg0, %c0_i32 : i32, i32
  }
  func.func @transform_1(%arg0: i32) -> (i32, i32, i32) {
    %c0_i32 = arith.constant 0 : i32
    %c0_i32_0 = arith.constant 0 : i32
    %c0_i32_1 = arith.constant 0 : i32
    %c0_i32_2 = arith.constant 0 : i32
    return %c0_i32, %c0_i32_0, %c0_i32_1 : i32, i32, i32
  }
  func.func @transform_2(%arg0: i32) -> (i32, i32, i32) {
    %c0_i32 = arith.constant 0 : i32
    %c0_i32_0 = arith.constant 0 : i32
    %c0_i32_1 = arith.constant 0 : i32
    %c0_i32_2 = arith.constant 0 : i32
    return %c0_i32, %c0_i32_0, %c0_i32_1 : i32, i32, i32
  }
  func.func @transform_3(%arg0: i32) -> (i32, i32) {
    %c0_i32 = arith.constant 0 : i32
    %c0_i32_0 = arith.constant 0 : i32
    %c0_i32_1 = arith.constant 0 : i32
    return %c0_i32, %c0_i32_0 : i32, i32
  }
  func.func @transform_4(%arg0: i32) -> (i32, i32) {
    %c0_i32 = arith.constant 0 : i32
    %c0_i32_0 = arith.constant 0 : i32
    %c0_i32_1 = arith.constant 0 : i32
    return %c0_i32, %c0_i32_0 : i32, i32
  }
  func.func @transform_5(%arg0: i32) -> (i32, i32) {
    %c0_i32 = arith.constant 0 : i32
    %c0_i32_0 = arith.constant 0 : i32
    %c0_i32_1 = arith.constant 0 : i32
    return %c0_i32, %c0_i32_0 : i32, i32
  }
  func.func @transform_6(%arg0: i32) -> (i32, i32) {
    %c0_i32 = arith.constant 0 : i32
    %c0_i32_0 = arith.constant 0 : i32
    %c0_i32_1 = arith.constant 0 : i32
    return %c0_i32, %c0_i32_0 : i32, i32
  }
  func.func @transform_7(%arg0: i32) -> (i32, i32) {
    %c0_i32 = arith.constant 0 : i32
    %c0_i32_0 = arith.constant 0 : i32
    %c0_i32_1 = arith.constant 0 : i32
    return %c0_i32, %c0_i32_0 : i32, i32
  }
  func.func @transform_8(%arg0: i32) -> (i32, i32, i32) {
    %c0_i32 = arith.constant 0 : i32
    %c0_i32_0 = arith.constant 0 : i32
    %c0_i32_1 = arith.constant 0 : i32
    %c0_i32_2 = arith.constant 0 : i32
    return %c0_i32, %c0_i32_0, %c0_i32_1 : i32, i32, i32
  }
  func.func @transform_9(%arg0: i32) -> (i32, i32, i32) {
    %c0_i32 = arith.constant 0 : i32
    %c0_i32_0 = arith.constant 0 : i32
    %c0_i32_1 = arith.constant 0 : i32
    %c0_i32_2 = arith.constant 0 : i32
    return %c0_i32, %c0_i32_0, %c0_i32_1 : i32, i32, i32
  }
  func.func @transform_10(%arg0: i32) -> (i32, i32) {
    %c0_i32 = arith.constant 0 : i32
    %c0_i32_0 = arith.constant 0 : i32
    %c0_i32_1 = arith.constant 0 : i32
    return %c0_i32, %c0_i32_0 : i32, i32
  }
  func.func @transform_11(%arg0: i32) -> (i32, i32) {
    %c0_i32 = arith.constant 0 : i32
    %c0_i32_0 = arith.constant 0 : i32
    %c0_i32_1 = arith.constant 0 : i32
    return %c0_i32, %c0_i32_0 : i32, i32
  }
  func.func @transform_12(%arg0: i32) -> (i32, i32) {
    %c0_i32 = arith.constant 0 : i32
    %c0_i32_0 = arith.constant 0 : i32
    return %arg0, %c0_i32 : i32, i32
  }
}

</mosaic_0001>

<llo_original>
// kernel: tpu_custom_call.1
$region0: #{tpu_custom_call.1}
  #allocation0 [shape = 'u32[]', space=smem, size = 0x4, offset = 0x4, fixed_abs, tag = 'smem constant byte address 0x4 - core index']
  #allocation1 [shape = 'u32[72,128]{1,0:T(1,128)}', space=vmem, size = 0x9000, scoped, tag = 'internal scratch']
  %s0 = inlined_call_operand.vmem [shape: f32[8,144], index: 0, kind: input, shape index: {}]
  %s1 = inlined_call_operand.vmem [shape: f32[6,144,16], index: 1, kind: input, shape index: {}]
  %s2 = inlined_call_operand.hbm [shape: f32[3,16,48], index: 2, kind: input, shape index: {}]
  %s3 = inlined_call_operand.vmem [shape: f32[16,16], index: 3, kind: input, shape index: {}]
  %s4 = inlined_call_operand.vmem [shape: f32[1,16], index: 4, kind: input, shape index: {}]
  %s5 = inlined_call_operand.vmem [shape: bf16[144,256], index: 5, kind: input, shape index: {}]
  %s6 = inlined_call_operand.hbm [shape: bf16[16,256], index: 6, kind: input, shape index: {}]
  %s7 = inlined_call_operand.vmem [shape: f32[1,256], index: 7, kind: input, shape index: {}]
  %s8 = inlined_call_operand.vmem [shape: bf16[4,256,256], index: 8, kind: input, shape index: {}]
  %s9 = inlined_call_operand.hbm [shape: f32[4,1,256], index: 9, kind: input, shape index: {}]
  %s10 = inlined_call_operand.vmem [shape: bf16[256,16], index: 10, kind: input, shape index: {}]
  %s11 = inlined_call_operand.vmem [shape: f32[1,16], index: 11, kind: input, shape index: {}]
  %s12 = inlined_call_operand.hbm [shape: f32[8,128], index: 12, kind: output, shape index: {}]
  %s13 = sld [smem:[#allocation0]]
  $region70: #{tpu_custom_call.1} parent=0
    _
  %s15 = ssub.s32 1, %s13
  %s16 = scalar_select 0, %s15, %s13
  $region1: #{tpu_custom_call.1} parent=0
    #allocation2 [shape = 'u8[24576]{0}', space=vmem, size = 0x6000, scoped, tag = 'input window, operand 2, single buffered']
    #allocation3 [shape = 's32[1]{0}', space=sflag, size = 0x4, scoped, tag = 'scoped memory for tpu_custom_call.1']
    #allocation4 [shape = 's32[1]{0}', space=sflag, size = 0x4, scoped, tag = 'scoped memory for tpu_custom_call.1']
    #allocation5 [shape = 'u8[8192]{0}', space=vmem, size = 0x2000, scoped, tag = 'input window, operand 6, single buffered']
    #allocation6 [shape = 's32[1]{0}', space=sflag, size = 0x4, scoped, tag = 'scoped memory for tpu_custom_call.1']
    #allocation7 [shape = 'u8[4096]{0}', space=vmem, size = 0x1000, scoped, tag = 'input window, operand 9, single buffered']
    #allocation8 [shape = 'u8[4096]{0}', space=vmem, size = 0x1000, scoped, tag = 'output window, operand 0, single buffered']
    %17 = vsyncpa [#allocation3], 0
    %18 = vsyncpa [#allocation6], 0
    %19 = vsyncpa [#allocation4], 0
    // Predicated region
    $region2: #{tpu_custom_call.1} parent=1 // pred_check
      _
    $region3: #{tpu_custom_call.1} parent=1 // pred_check_branch
      %21 = sbr.rel (0) target = $region5
    $region4: #{tpu_custom_call.1} parent=1 // pred_region
      _
    $region5: #{tpu_custom_call.1} parent=1 // pred_fallthru
      _
    // Predicated region
    $region6: #{tpu_custom_call.1} parent=1 // pred_check
      _
    $region7: #{tpu_custom_call.1} parent=1 // pred_check_branch
      %23 = sbr.rel (0) target = $region9
    $region8: #{tpu_custom_call.1} parent=1 // pred_region
      _
    $region9: #{tpu_custom_call.1} parent=1 // pred_fallthru
      _
    // Predicated region
    $region10: #{tpu_custom_call.1} parent=1 // pred_check
      _
    $region11: #{tpu_custom_call.1} parent=1 // pred_check_branch
      %25 = sbr.rel (0) target = $region13
    $region12: #{tpu_custom_call.1} parent=1 // pred_region
      %27 = vsyncadd [#allocation3], 0
      %s28 = sshll.u32 %s2, 4
      %s29 = int_to_ptr.hbm [resolvable:$true] %s28
      %s30 = sshll.u32 [#allocation2], 4
      %s31 = int_to_ptr.vmem [resolvable:$true] %s30
      %36 = dma.hbm_to_vmem [thread:$0]  %s29, 768, %s31, [#allocation3], 128, 128, 8
    $region13: #{tpu_custom_call.1} parent=1 // pred_fallthru
      _
    // Predicated region
    $region14: #{tpu_custom_call.1} parent=1 // pred_check
      _
    $region15: #{tpu_custom_call.1} parent=1 // pred_check_branch
      %38 = sbr.rel (0) target = $region17
    $region16: #{tpu_custom_call.1} parent=1 // pred_region
      _
    $region17: #{tpu_custom_call.1} parent=1 // pred_fallthru
      _
    // Predicated region
    $region18: #{tpu_custom_call.1} parent=1 // pred_check
      _
    $region19: #{tpu_custom_call.1} parent=1 // pred_check_branch
      %40 = sbr.rel (0) target = $region21
    $region20: #{tpu_custom_call.1} parent=1 // pred_region
      _
    $region21: #{tpu_custom_call.1} parent=1 // pred_fallthru
      _
    // Predicated region
    $region22: #{tpu_custom_call.1} parent=1 // pred_check
      _
    $region23: #{tpu_custom_call.1} parent=1 // pred_check_branch
      %42 = sbr.rel (0) target = $region25
    $region24: #{tpu_custom_call.1} parent=1 // pred_region
      _
    $region25: #{tpu_custom_call.1} parent=1 // pred_fallthru
      _
    // Predicated region
    $region26: #{tpu_custom_call.1} parent=1 // pred_check
      _
    $region27: #{tpu_custom_call.1} parent=1 // pred_check_branch
      %44 = sbr.rel (0) target = $region29
    $region28: #{tpu_custom_call.1} parent=1 // pred_region
      %46 = vsyncadd [#allocation6], 0
      %s47 = sshll.u32 %s6, 4
      %s48 = int_to_ptr.hbm [resolvable:$true] %s47
      %s49 = sshll.u32 [#allocation5], 4
      %s50 = int_to_ptr.vmem [resolvable:$true] %s49
      %55 = dma.hbm_to_vmem [thread:$0]  %s48, 256, %s50, [#allocation6], 128, 128, 8
    $region29: #{tpu_custom_call.1} parent=1 // pred_fallthru
      _
    // Predicated region
    $region30: #{tpu_custom_call.1} parent=1 // pred_check
      _
    $region31: #{tpu_custom_call.1} parent=1 // pred_check_branch
      %57 = sbr.rel (0) target = $region33
    $region32: #{tpu_custom_call.1} parent=1 // pred_region
      _
    $region33: #{tpu_custom_call.1} parent=1 // pred_fallthru
      _
    // Predicated region
    $region34: #{tpu_custom_call.1} parent=1 // pred_check
      _
    $region35: #{tpu_custom_call.1} parent=1 // pred_check_branch
      %59 = sbr.rel (0) target = $region37
    $region36: #{tpu_custom_call.1} parent=1 // pred_region
      _
    $region37: #{tpu_custom_call.1} parent=1 // pred_fallthru
      _
    // Predicated region
    $region38: #{tpu_custom_call.1} parent=1 // pred_check
      _
    $region39: #{tpu_custom_call.1} parent=1 // pred_check_branch
      %61 = sbr.rel (0) target = $region41
    $region40: #{tpu_custom_call.1} parent=1 // pred_region
      %63 = vsyncadd [#allocation6], 0
      %s64 = sshll.u32 %s9, 4
      %s65 = int_to_ptr.hbm [resolvable:$true] %s64
      %s66 = sshll.u32 [#allocation7], 4
      %s67 = int_to_ptr.vmem [resolvable:$true] %s66
      %72 = dma.hbm_to_vmem [thread:$0]  %s65, 128, %s67, [#allocation6], 32, 32, 2
    $region41: #{tpu_custom_call.1} parent=1 // pred_fallthru
      _
    // Predicated region
    $region42: #{tpu_custom_call.1} parent=1 // pred_check
      _
    $region43: #{tpu_custom_call.1} parent=1 // pred_check_branch
      %74 = sbr.rel (0) target = $region45
    $region44: #{tpu_custom_call.1} parent=1 // pred_region
      _
    $region45: #{tpu_custom_call.1} parent=1 // pred_fallthru
      _
    // Predicated region
    $region46: #{tpu_custom_call.1} parent=1 // pred_check
      _
    $region47: #{tpu_custom_call.1} parent=1 // pred_check_branch
      %76 = sbr.rel (0) target = $region49
    $region48: #{tpu_custom_call.1} parent=1 // pred_region
      _
    $region49: #{tpu_custom_call.1} parent=1 // pred_fallthru
      _
    // Predicated region
    $region50: #{tpu_custom_call.1} parent=1 // pred_check
      _
    $region51: #{tpu_custom_call.1} parent=1 // pred_check_branch
      %78 = sbr.rel (0) target = $region53
    $region52: #{tpu_custom_call.1} parent=1 // pred_region
      %80 = dma.done [#allocation3], 768
    $region53: #{tpu_custom_call.1} parent=1 // pred_fallthru
      _
    // Predicated region
    $region54: #{tpu_custom_call.1} parent=1 // pred_check
      _
    $region55: #{tpu_custom_call.1} parent=1 // pred_check_branch
      %82 = sbr.rel (0) target = $region57
    $region56: #{tpu_custom_call.1} parent=1 // pred_region
      %84 = dma.done [#allocation6], 256
    $region57: #{tpu_custom_call.1} parent=1 // pred_fallthru
      _
    // Predicated region
    $region58: #{tpu_custom_call.1} parent=1 // pred_check
      _
    $region59: #{tpu_custom_call.1} parent=1 // pred_check_branch
      %86 = sbr.rel (0) target = $region61
    $region60: #{tpu_custom_call.1} parent=1 // pred_region
      %88 = dma.done [#allocation6], 128
    $region61: #{tpu_custom_call.1} parent=1 // pred_fallthru
      _
    %v90 = vld [vmem:[%s0] sm:$0xff]
    %v91 = vld [vmem:[%s0 + $0x8] sm:$0xff]
    %v92 = vld [vmem:[%s1] sm:$0xff]
    %v93 = vld [vmem:[%s1 + $0x8] sm:$0xff]
    %v94 = vld [vmem:[%s1 + $0x10] sm:$0xff]
    %v95 = vld [vmem:[%s1 + $0x18] sm:$0xff]
    %v96 = vld [vmem:[%s1 + $0x20] sm:$0xff]
    %v97 = vld [vmem:[%s1 + $0x28] sm:$0xff]
    %v98 = vld [vmem:[%s1 + $0x30] sm:$0xff]
    %v99 = vld [vmem:[%s1 + $0x38] sm:$0xff]
    %v100 = vld [vmem:[%s1 + $0x40] sm:$0xff]
    %v101 = vld [vmem:[%s1 + $0x48] sm:$0xff]
    %v102 = vld [vmem:[%s1 + $0x50] sm:$0xff]
    %v103 = vld [vmem:[%s1 + $0x58] sm:$0xff]
    %v104 = vld [vmem:[%s1 + $0x60] sm:$0xff]
    %v105 = vld [vmem:[%s1 + $0x68] sm:$0xff]
    %v106 = vld [vmem:[%s1 + $0x70] sm:$0xff]
    %v107 = vld [vmem:[%s1 + $0x78] sm:$0xff]
    %v108 = vld [vmem:[%s1 + $0x80] sm:$0xff]
    %v109 = vld [vmem:[%s1 + $0x88] sm:$0xff]
    %vm110 = vcmask 130048
    %v112 = vsel %vm110, %v91, 0
    %114 = vmatpush.msra.mxu0 %v107
    %115 = vmatpush.msra.mxu0 %v106
    %116 = vmatpush.msra.mxu0 %v105
    %117 = vmatpush.msra.mxu0 %v104
    %118 = vmatpush.msra.mxu0 %v103
    %119 = vmatpush.msra.mxu0 %v102
    %120 = vmatpush.msra.mxu0 %v101
    %121 = vmatpush.msra.mxu0 %v100
    %122 = vmatpush.msra.mxu0 %v99
    %123 = vmatpush.msra.mxu0 %v98
    %124 = vmatpush.msra.mxu0 %v97
    %125 = vmatpush.msra.mxu0 %v96
    %126 = vmatpush.msra.mxu0 %v95
    %127 = vmatpush.msra.mxu0 %v94
    %128 = vmatpush.msra.mxu0 %v93
    %129 = vmatpush.msra.mxu0 %v92
    %130 = vmatmul.f32.gmra.mxu0 %v90
    %v131 = vpop.f32.mrf.mxu0
    %v132 = vadd.f32 0.0, %v131
    %133 = vdwg.mxu0
    %134 = vmatpush.msra.mxu0 0.0
    %135 = vmatpush.msra.mxu0 0.0
    %136 = vmatpush.msra.mxu0 0.0
    %137 = vmatpush.msra.mxu0 0.0
    %138 = vmatpush.msra.mxu0 0.0
    %139 = vmatpush.msra.mxu0 0.0
    %140 = vmatpush.msra.mxu0 0.0
    %141 = vmatpush.msra.mxu0 0.0
    %142 = vmatpush.msra.mxu0 0.0
    %143 = vmatpush.msra.mxu0 0.0
    %144 = vmatpush.msra.mxu0 0.0
    %145 = vmatpush.msra.mxu0 0.0
    %146 = vmatpush.msra.mxu0 0.0
    %147 = vmatpush.msra.mxu0 0.0
    %148 = vmatpush.msra.mxu0 %v109
    %149 = vmatpush.msra.mxu0 %v108
    %150 = vmatmul.f32.gmra.mxu0 %v112
    %v151 = vpop.f32.mrf.mxu0
    %v152 = vadd.f32 %v132, %v151
    %153 = vdwg.mxu0
    %s154 = scalar_lea.vmem %s1, 144
    %v155 = vld [vmem:[%s154] sm:$0xff]
    %v156 = vld [vmem:[%s154 + $0x8] sm:$0xff]
    %v157 = vld [vmem:[%s154 + $0x10] sm:$0xff]
    %v158 = vld [vmem:[%s154 + $0x18] sm:$0xff]
    %v159 = vld [vmem:[%s154 + $0x20] sm:$0xff]
    %v160 = vld [vmem:[%s154 + $0x28] sm:$0xff]
    %v161 = vld [vmem:[%s154 + $0x30] sm:$0xff]
    %v162 = vld [vmem:[%s154 + $0x38] sm:$0xff]
    %v163 = vld [vmem:[%s154 + $0x40] sm:$0xff]
    %v164 = vld [vmem:[%s154 + $0x48] sm:$0xff]
    %v165 = vld [vmem:[%s154 + $0x50] sm:$0xff]
    %v166 = vld [vmem:[%s154 + $0x58] sm:$0xff]
    %v167 = vld [vmem:[%s154 + $0x60] sm:$0xff]
    %v168 = vld [vmem:[%s154 + $0x68] sm:$0xff]
    %v169 = vld [vmem:[%s154 + $0x70] sm:$0xff]
    %v170 = vld [vmem:[%s154 + $0x78] sm:$0xff]
    %v171 = vld [vmem:[%s154 + $0x80] sm:$0xff]
    %v172 = vld [vmem:[%s154 + $0x88] sm:$0xff]
    %173 = vmatpush.msra.mxu0 %v170
    %174 = vmatpush.msra.mxu0 %v169
    %175 = vmatpush.msra.mxu0 %v168
    %176 = vmatpush.msra.mxu0 %v167
    %177 = vmatpush.msra.mxu0 %v166
    %178 = vmatpush.msra.mxu0 %v165
    %179 = vmatpush.msra.mxu0 %v164
    %180 = vmatpush.msra.mxu0 %v163
    %181 = vmatpush.msra.mxu0 %v162
    %182 = vmatpush.msra.mxu0 %v161
    %183 = vmatpush.msra.mxu0 %v160
    %184 = vmatpush.msra.mxu0 %v159
    %185 = vmatpush.msra.mxu0 %v158
    %186 = vmatpush.msra.mxu0 %v157
    %187 = vmatpush.msra.mxu0 %v156
    %188 = vmatpush.msra.mxu0 %v155
    %189 = vmatmul.f32.gmra.mxu0 %v90
    %v190 = vpop.f32.mrf.mxu0
    %v191 = vadd.f32 0.0, %v190
    %192 = vdwg.mxu0
    %193 = vmatpush.msra.mxu0 0.0
    %194 = vmatpush.msra.mxu0 0.0
    %195 = vmatpush.msra.mxu0 0.0
    %196 = vmatpush.msra.mxu0 0.0
    %197 = vmatpush.msra.mxu0 0.0
    %198 = vmatpush.msra.mxu0 0.0
    %199 = vmatpush.msra.mxu0 0.0
    %200 = vmatpush.msra.mxu0 0.0
    %201 = vmatpush.msra.mxu0 0.0
    %202 = vmatpush.msra.mxu0 0.0
    %203 = vmatpush.msra.mxu0 0.0
    %204 = vmatpush.msra.mxu0 0.0
    %205 = vmatpush.msra.mxu0 0.0
    %206 = vmatpush.msra.mxu0 0.0
    %207 = vmatpush.msra.mxu0 %v172
    %208 = vmatpush.msra.mxu0 %v171
    %209 = vmatmul.f32.gmra.mxu0 %v112
    %v210 = vpop.f32.mrf.mxu0
    %v211 = vadd.f32 %v191, %v210
    %212 = vdwg.mxu0
    %s213 = scalar_lea.vmem %s1, 288
    %v214 = vld [vmem:[%s213] sm:$0xff]
    %v215 = vld [vmem:[%s213 + $0x8] sm:$0xff]
    %v216 = vld [vmem:[%s213 + $0x10] sm:$0xff]
    %v217 = vld [vmem:[%s213 + $0x18] sm:$0xff]
    %v218 = vld [vmem:[%s213 + $0x20] sm:$0xff]
    %v219 = vld [vmem:[%s213 + $0x28] sm:$0xff]
    %v220 = vld [vmem:[%s213 + $0x30] sm:$0xff]
    %v221 = vld [vmem:[%s213 + $0x38] sm:$0xff]
    %v222 = vld [vmem:[%s213 + $0x40] sm:$0xff]
    %v223 = vld [vmem:[%s213 + $0x48] sm:$0xff]
    %v224 = vld [vmem:[%s213 + $0x50] sm:$0xff]
    %v225 = vld [vmem:[%s213 + $0x58] sm:$0xff]
    %v226 = vld [vmem:[%s213 + $0x60] sm:$0xff]
    %v227 = vld [vmem:[%s213 + $0x68] sm:$0xff]
    %v228 = vld [vmem:[%s213 + $0x70] sm:$0xff]
    %v229 = vld [vmem:[%s213 + $0x78] sm:$0xff]
    %v230 = vld [vmem:[%s213 + $0x80] sm:$0xff]
    %v231 = vld [vmem:[%s213 + $0x88] sm:$0xff]
    %232 = vmatpush.msra.mxu0 %v229
    %233 = vmatpush.msra.mxu0 %v228
    %234 = vmatpush.msra.mxu0 %v227
    %235 = vmatpush.msra.mxu0 %v226
    %236 = vmatpush.msra.mxu0 %v225
    %237 = vmatpush.msra.mxu0 %v224
    %238 = vmatpush.msra.mxu0 %v223
    %239 = vmatpush.msra.mxu0 %v222
    %240 = vmatpush.msra.mxu0 %v221
    %241 = vmatpush.msra.mxu0 %v220
    %242 = vmatpush.msra.mxu0 %v219
    %243 = vmatpush.msra.mxu0 %v218
    %244 = vmatpush.msra.mxu0 %v217
    %245 = vmatpush.msra.mxu0 %v216
    %246 = vmatpush.msra.mxu0 %v215
    %247 = vmatpush.msra.mxu0 %v214
    %248 = vmatmul.f32.gmra.mxu0 %v90
    %v249 = vpop.f32.mrf.mxu0
    %v250 = vadd.f32 0.0, %v249
    %251 = vdwg.mxu0
    %252 = vmatpush.msra.mxu0 0.0
    %253 = vmatpush.msra.mxu0 0.0
    %254 = vmatpush.msra.mxu0 0.0
    %255 = vmatpush.msra.mxu0 0.0
    %256 = vmatpush.msra.mxu0 0.0
    %257 = vmatpush.msra.mxu0 0.0
    %258 = vmatpush.msra.mxu0 0.0
    %259 = vmatpush.msra.mxu0 0.0
    %260 = vmatpush.msra.mxu0 0.0
    %261 = vmatpush.msra.mxu0 0.0
    %262 = vmatpush.msra.mxu0 0.0
    %263 = vmatpush.msra.mxu0 0.0
    %264 = vmatpush.msra.mxu0 0.0
    %265 = vmatpush.msra.mxu0 0.0
    %266 = vmatpush.msra.mxu0 %v231
    %267 = vmatpush.msra.mxu0 %v230
    %268 = vmatmul.f32.gmra.mxu0 %v112
    %v269 = vpop.f32.mrf.mxu0
    %v270 = vadd.f32 %v250, %v269
    %271 = vdwg.mxu0
    %s272 = scalar_lea.vmem %s1, 432
    %v273 = vld [vmem:[%s272] sm:$0xff]
    %v274 = vld [vmem:[%s272 + $0x8] sm:$0xff]
    %v275 = vld [vmem:[%s272 + $0x10] sm:$0xff]
    %v276 = vld [vmem:[%s272 + $0x18] sm:$0xff]
    %v277 = vld [vmem:[%s272 + $0x20] sm:$0xff]
    %v278 = vld [vmem:[%s272 + $0x28] sm:$0xff]
    %v279 = vld [vmem:[%s272 + $0x30] sm:$0xff]
    %v280 = vld [vmem:[%s272 + $0x38] sm:$0xff]
    %v281 = vld [vmem:[%s272 + $0x40] sm:$0xff]
    %v282 = vld [vmem:[%s272 + $0x48] sm:$0xff]
    %v283 = vld [vmem:[%s272 + $0x50] sm:$0xff]
    %v284 = vld [vmem:[%s272 + $0x58] sm:$0xff]
    %v285 = vld [vmem:[%s272 + $0x60] sm:$0xff]
    %v286 = vld [vmem:[%s272 + $0x68] sm:$0xff]
    %v287 = vld [vmem:[%s272 + $0x70] sm:$0xff]
    %v288 = vld [vmem:[%s272 + $0x78] sm:$0xff]
    %v289 = vld [vmem:[%s272 + $0x80] sm:$0xff]
    %v290 = vld [vmem:[%s272 + $0x88] sm:$0xff]
    %291 = vmatpush.msra.mxu0 %v288
    %292 = vmatpush.msra.mxu0 %v287
    %293 = vmatpush.msra.mxu0 %v286
    %294 = vmatpush.msra.mxu0 %v285
    %295 = vmatpush.msra.mxu0 %v284
    %296 = vmatpush.msra.mxu0 %v283
    %297 = vmatpush.msra.mxu0 %v282
    %298 = vmatpush.msra.mxu0 %v281
    %299 = vmatpush.msra.mxu0 %v280
    %300 = vmatpush.msra.mxu0 %v279
    %301 = vmatpush.msra.mxu0 %v278
    %302 = vmatpush.msra.mxu0 %v277
    %303 = vmatpush.msra.mxu0 %v276
    %304 = vmatpush.msra.mxu0 %v275
    %305 = vmatpush.msra.mxu0 %v274
    %306 = vmatpush.msra.mxu0 %v273
    %307 = vmatmul.f32.gmra.mxu0 %v90
    %v308 = vpop.f32.mrf.mxu0
    %v309 = vadd.f32 0.0, %v308
    %310 = vdwg.mxu0
    %311 = vmatpush.msra.mxu0 0.0
    %312 = vmatpush.msra.mxu0 0.0
    %313 = vmatpush.msra.mxu0 0.0
    %314 = vmatpush.msra.mxu0 0.0
    %315 = vmatpush.msra.mxu0 0.0
    %316 = vmatpush.msra.mxu0 0.0
    %317 = vmatpush.msra.mxu0 0.0
    %318 = vmatpush.msra.mxu0 0.0
    %319 = vmatpush.msra.mxu0 0.0
    %320 = vmatpush.msra.mxu0 0.0
    %321 = vmatpush.msra.mxu0 0.0
    %322 = vmatpush.msra.mxu0 0.0
    %323 = vmatpush.msra.mxu0 0.0
    %324 = vmatpush.msra.mxu0 0.0
    %325 = vmatpush.msra.mxu0 %v290
    %326 = vmatpush.msra.mxu0 %v289
    %327 = vmatmul.f32.gmra.mxu0 %v112
    %v328 = vpop.f32.mrf.mxu0
    %v329 = vadd.f32 %v309, %v328
    %330 = vdwg.mxu0
    %s331 = scalar_lea.vmem %s1, 576
    %v332 = vld [vmem:[%s331] sm:$0xff]
    %v333 = vld [vmem:[%s331 + $0x8] sm:$0xff]
    %v334 = vld [vmem:[%s331 + $0x10] sm:$0xff]
    %v335 = vld [vmem:[%s331 + $0x18] sm:$0xff]
    %v336 = vld [vmem:[%s331 + $0x20] sm:$0xff]
    %v337 = vld [vmem:[%s331 + $0x28] sm:$0xff]
    %v338 = vld [vmem:[%s331 + $0x30] sm:$0xff]
    %v339 = vld [vmem:[%s331 + $0x38] sm:$0xff]
    %v340 = vld [vmem:[%s331 + $0x40] sm:$0xff]
    %v341 = vld [vmem:[%s331 + $0x48] sm:$0xff]
    %v342 = vld [vmem:[%s331 + $0x50] sm:$0xff]
    %v343 = vld [vmem:[%s331 + $0x58] sm:$0xff]
    %v344 = vld [vmem:[%s331 + $0x60] sm:$0xff]
    %v345 = vld [vmem:[%s331 + $0x68] sm:$0xff]
    %v346 = vld [vmem:[%s331 + $0x70] sm:$0xff]
    %v347 = vld [vmem:[%s331 + $0x78] sm:$0xff]
    %v348 = vld [vmem:[%s331 + $0x80] sm:$0xff]
    %v349 = vld [vmem:[%s331 + $0x88] sm:$0xff]
    %350 = vmatpush.msra.mxu0 %v347
    %351 = vmatpush.msra.mxu0 %v346
    %352 = vmatpush.msra.mxu0 %v345
    %353 = vmatpush.msra.mxu0 %v344
    %354 = vmatpush.msra.mxu0 %v343
    %355 = vmatpush.msra.mxu0 %v342
    %356 = vmatpush.msra.mxu0 %v341
    %357 = vmatpush.msra.mxu0 %v340
    %358 = vmatpush.msra.mxu0 %v339
    %359 = vmatpush.msra.mxu0 %v338
    %360 = vmatpush.msra.mxu0 %v337
    %361 = vmatpush.msra.mxu0 %v336
    %362 = vmatpush.msra.mxu0 %v335
    %363 = vmatpush.msra.mxu0 %v334
    %364 = vmatpush.msra.mxu0 %v333
    %365 = vmatpush.msra.mxu0 %v332
    %366 = vmatmul.f32.gmra.mxu0 %v90
    %v367 = vpop.f32.mrf.mxu0
    %v368 = vadd.f32 0.0, %v367
    %369 = vdwg.mxu0
    %370 = vmatpush.msra.mxu0 0.0
    %371 = vmatpush.msra.mxu0 0.0
    %372 = vmatpush.msra.mxu0 0.0
    %373 = vmatpush.msra.mxu0 0.0
    %374 = vmatpush.msra.mxu0 0.0
    %375 = vmatpush.msra.mxu0 0.0
    %376 = vmatpush.msra.mxu0 0.0
    %377 = vmatpush.msra.mxu0 0.0
    %378 = vmatpush.msra.mxu0 0.0
    %379 = vmatpush.msra.mxu0 0.0
    %380 = vmatpush.msra.mxu0 0.0
    %381 = vmatpush.msra.mxu0 0.0
    %382 = vmatpush.msra.mxu0 0.0
    %383 = vmatpush.msra.mxu0 0.0
    %384 = vmatpush.msra.mxu0 %v349
    %385 = vmatpush.msra.mxu0 %v348
    %386 = vmatmul.f32.gmra.mxu0 %v112
    %v387 = vpop.f32.mrf.mxu0
    %v388 = vadd.f32 %v368, %v387
    %389 = vdwg.mxu0
    %s390 = scalar_lea.vmem %s1, 720
    %v391 = vld [vmem:[%s390] sm:$0xff]
    %v392 = vld [vmem:[%s390 + $0x8] sm:$0xff]
    %v393 = vld [vmem:[%s390 + $0x10] sm:$0xff]
    %v394 = vld [vmem:[%s390 + $0x18] sm:$0xff]
    %v395 = vld [vmem:[%s390 + $0x20] sm:$0xff]
    %v396 = vld [vmem:[%s390 + $0x28] sm:$0xff]
    %v397 = vld [vmem:[%s390 + $0x30] sm:$0xff]
    %v398 = vld [vmem:[%s390 + $0x38] sm:$0xff]
    %v399 = vld [vmem:[%s390 + $0x40] sm:$0xff]
    %v400 = vld [vmem:[%s390 + $0x48] sm:$0xff]
    %v401 = vld [vmem:[%s390 + $0x50] sm:$0xff]
    %v402 = vld [vmem:[%s390 + $0x58] sm:$0xff]
    %v403 = vld [vmem:[%s390 + $0x60] sm:$0xff]
    %v404 = vld [vmem:[%s390 + $0x68] sm:$0xff]
    %v405 = vld [vmem:[%s390 + $0x70] sm:$0xff]
    %v406 = vld [vmem:[%s390 + $0x78] sm:$0xff]
    %v407 = vld [vmem:[%s390 + $0x80] sm:$0xff]
    %v408 = vld [vmem:[%s390 + $0x88] sm:$0xff]
    %409 = vmatpush.msra.mxu0 %v406
    %410 = vmatpush.msra.mxu0 %v405
    %411 = vmatpush.msra.mxu0 %v404
    %412 = vmatpush.msra.mxu0 %v403
    %413 = vmatpush.msra.mxu0 %v402
    %414 = vmatpush.msra.mxu0 %v401
    %415 = vmatpush.msra.mxu0 %v400
    %416 = vmatpush.msra.mxu0 %v399
    %417 = vmatpush.msra.mxu0 %v398
    %418 = vmatpush.msra.mxu0 %v397
    %419 = vmatpush.msra.mxu0 %v396
    %420 = vmatpush.msra.mxu0 %v395
    %421 = vmatpush.msra.mxu0 %v394
    %422 = vmatpush.msra.mxu0 %v393
    %423 = vmatpush.msra.mxu0 %v392
    %424 = vmatpush.msra.mxu0 %v391
    %425 = vmatmul.f32.gmra.mxu0 %v90
    %v426 = vpop.f32.mrf.mxu0
    %v427 = vadd.f32 0.0, %v426
    %428 = vdwg.mxu0
    %429 = vmatpush.msra.mxu0 0.0
    %430 = vmatpush.msra.mxu0 0.0
    %431 = vmatpush.msra.mxu0 0.0
    %432 = vmatpush.msra.mxu0 0.0
    %433 = vmatpush.msra.mxu0 0.0
    %434 = vmatpush.msra.mxu0 0.0
    %435 = vmatpush.msra.mxu0 0.0
    %436 = vmatpush.msra.mxu0 0.0
    %437 = vmatpush.msra.mxu0 0.0
    %438 = vmatpush.msra.mxu0 0.0
    %439 = vmatpush.msra.mxu0 0.0
    %440 = vmatpush.msra.mxu0 0.0
    %441 = vmatpush.msra.mxu0 0.0
    %442 = vmatpush.msra.mxu0 0.0
    %443 = vmatpush.msra.mxu0 %v408
    %444 = vmatpush.msra.mxu0 %v407
    %445 = vmatmul.f32.gmra.mxu0 %v112
    %v446 = vpop.f32.mrf.mxu0
    %v447 = vadd.f32 %v427, %v446
    %448 = vdwg.mxu0
    %v449 = vmul.f32 %v152, %v152
    %v450 = vmul.f32 %v211, %v211
    %v451 = vadd.f32 %v449, %v450
    %v452 = vmul.f32 %v270, %v270
    %v453 = vadd.f32 %v451, %v452
    %v454 = vrsqrt.pop %v453
    %v455 = vmul.f32 %v454, %v453
    %v456 = vmul.f32 %v455, %v454
    %v457 = vmul.f32 0.5, %v456
    %v458 = vsub.f32 1.5, %v457
    %v459 = vmul.f32 %v454, %v458
    %v460 = vmul.f32 %v453, %v459
    %vm461 = vcmp.eq.f32.partialorder %v453, inf
    %v462 = vsel %vm461, %v453, %v460
    %vm463 = vcmp.eq.f32.partialorder %v453, 0.0
    %v464 = vand.u32 %v453, 2147483648
    %v465 = vsel %vm463, %v464, %v462
    %v466 = vpack.c.bf16 %v90, %v90
    %v467 = vpack.c.bf16 %v91, %v91
    %v468 = vld [vmem:[%s5] sm:$0xff]
    %v469 = vld [vmem:[%s5 + $0x8] sm:$0xff]
    %v470 = vld [vmem:[%s5 + $0x10] sm:$0xff]
    %v471 = vld [vmem:[%s5 + $0x18] sm:$0xff]
    %v472 = vld [vmem:[%s5 + $0x20] sm:$0xff]
    %v473 = vld [vmem:[%s5 + $0x28] sm:$0xff]
    %v474 = vld [vmem:[%s5 + $0x30] sm:$0xff]
    %v475 = vld [vmem:[%s5 + $0x38] sm:$0xff]
    %v476 = vld [vmem:[%s5 + $0x40] sm:$0xff]
    %v477 = vld [vmem:[%s5 + $0x48] sm:$0xff]
    %v478 = vld [vmem:[%s5 + $0x50] sm:$0xff]
    %v479 = vld [vmem:[%s5 + $0x58] sm:$0xff]
    %v480 = vld [vmem:[%s5 + $0x60] sm:$0xff]
    %v481 = vld [vmem:[%s5 + $0x68] sm:$0xff]
    %v482 = vld [vmem:[%s5 + $0x70] sm:$0xff]
    %v483 = vld [vmem:[%s5 + $0x78] sm:$0xff]
    %v484 = vld [vmem:[%s5 + $0x80] sm:$0xff]
    %v485 = vld [vmem:[%s5 + $0x88] sm:$0xff]
    %v486 = vpack.c.bf16 %v465, %v465
    %v487 = vld [vmem:[#allocation5] sm:$0xff]
    %v488 = vld [vmem:[#allocation5 + $0x8] sm:$0xff]
    %v491 = vunpack.c.l.b16 %v487
    %v492 = vunpack.c.h.b16 %v487
    %v493 = vunpack.c.l.b16 %v488
    %v494 = vunpack.c.h.b16 %v488
    %v495 = vpack.c.b16 %v493, %v491
    %v496 = vpack.c.b16 %v494, %v492
    %v500 = vsel %vm110, %v486, 0
    %502 = vmatpush.bf16.msra.mxu0 0
    %503 = vmatpush.bf16.msra.mxu0 0
    %504 = vmatpush.bf16.msra.mxu0 0
    %505 = vmatpush.bf16.msra.mxu0 0
    %506 = vmatpush.bf16.msra.mxu0 0
    %507 = vmatpush.bf16.msra.mxu0 0
    %508 = vmatpush.bf16.msra.mxu0 0
    %509 = vmatpush.bf16.msra.mxu0 %v495
    %510 = vmatmul.bf16.gmra.mxu0 %v500
    %v511 = vpop.f32.mrf.mxu0
    %v512 = vadd.f32 0.0, %v511
    %v513 = vpop.f32.mrf.mxu0
    %514 = vdwg.mxu0
    %515 = vmatpush.bf16.msra.mxu0 0
    %516 = vmatpush.bf16.msra.mxu0 0
    %517 = vmatpush.bf16.msra.mxu0 0
    %518 = vmatpush.bf16.msra.mxu0 0
    %519 = vmatpush.bf16.msra.mxu0 0
    %520 = vmatpush.bf16.msra.mxu0 0
    %521 = vmatpush.bf16.msra.mxu0 0
    %522 = vmatpush.bf16.msra.mxu0 %v496
    %523 = vmatmul.bf16.gmra.mxu0 %v500
    %v524 = vpop.f32.mrf.mxu0
    %v525 = vadd.f32 0.0, %v524
    %v526 = vpop.f32.mrf.mxu0
    %527 = vdwg.mxu0
    %v546 = vunpack.c.l.b16 %v468
    %v547 = vunpack.c.h.b16 %v468
    %v548 = vunpack.c.l.b16 %v469
    %v549 = vunpack.c.h.b16 %v469
    %v550 = vunpack.c.l.b16 %v470
    %v551 = vunpack.c.h.b16 %v470
    %v552 = vunpack.c.l.b16 %v471
    %v553 = vunpack.c.h.b16 %v471
    %v554 = vunpack.c.l.b16 %v472
    %v555 = vunpack.c.h.b16 %v472
    %v556 = vunpack.c.l.b16 %v473
    %v557 = vunpack.c.h.b16 %v473
    %v558 = vunpack.c.l.b16 %v474
    %v559 = vunpack.c.h.b16 %v474
    %v560 = vunpack.c.l.b16 %v475
    %v561 = vunpack.c.h.b16 %v475
    %v562 = vunpack.c.l.b16 %v476
    %v563 = vunpack.c.h.b16 %v476
    %v564 = vunpack.c.l.b16 %v477
    %v565 = vunpack.c.h.b16 %v477
    %v566 = vunpack.c.l.b16 %v478
    %v567 = vunpack.c.h.b16 %v478
    %v568 = vunpack.c.l.b16 %v479
    %v569 = vunpack.c.h.b16 %v479
    %v570 = vunpack.c.l.b16 %v480
    %v571 = vunpack.c.h.b16 %v480
    %v572 = vunpack.c.l.b16 %v481
    %v573 = vunpack.c.h.b16 %v481
    %v574 = vunpack.c.l.b16 %v482
    %v575 = vunpack.c.h.b16 %v482
    %v576 = vunpack.c.l.b16 %v483
    %v577 = vunpack.c.h.b16 %v483
    %v578 = vunpack.c.l.b16 %v484
    %v579 = vunpack.c.h.b16 %v484
    %v580 = vunpack.c.l.b16 %v485
    %v581 = vunpack.c.h.b16 %v485
    %v582 = vpack.c.b16 %v548, %v546
    %v583 = vpack.c.b16 %v549, %v547
    %v584 = vpack.c.b16 %v552, %v550
    %v585 = vpack.c.b16 %v553, %v551
    %v586 = vpack.c.b16 %v556, %v554
    %v587 = vpack.c.b16 %v557, %v555
    %v588 = vpack.c.b16 %v560, %v558
    %v589 = vpack.c.b16 %v561, %v559
    %v590 = vpack.c.b16 %v564, %v562
    %v591 = vpack.c.b16 %v565, %v563
    %v592 = vpack.c.b16 %v568, %v566
    %v593 = vpack.c.b16 %v569, %v567
    %v594 = vpack.c.b16 %v572, %v570
    %v595 = vpack.c.b16 %v573, %v571
    %v596 = vpack.c.b16 %v576, %v574
    %v597 = vpack.c.b16 %v577, %v575
    %v598 = vpack.c.b16 %v580, %v578
    %v599 = vpack.c.b16 %v581, %v579
    %v619 = vsel %vm110, %v467, 0
    %621 = vmatpush.bf16.msra.mxu0 %v596
    %622 = vmatpush.bf16.msra.mxu0 %v594
    %623 = vmatpush.bf16.msra.mxu0 %v592
    %624 = vmatpush.bf16.msra.mxu0 %v590
    %625 = vmatpush.bf16.msra.mxu0 %v588
    %626 = vmatpush.bf16.msra.mxu0 %v586
    %627 = vmatpush.bf16.msra.mxu0 %v584
    %628 = vmatpush.bf16.msra.mxu0 %v582
    %629 = vmatmul.bf16.gmra.mxu0 %v466
    %v630 = vpop.f32.mrf.mxu0
    %v631 = vadd.f32 %v512, %v630
    %v632 = vpop.f32.mrf.mxu0
    %633 = vdwg.mxu0
    %634 = vmatpush.bf16.msra.mxu0 0
    %635 = vmatpush.bf16.msra.mxu0 0
    %636 = vmatpush.bf16.msra.mxu0 0
    %637 = vmatpush.bf16.msra.mxu0 0
    %638 = vmatpush.bf16.msra.mxu0 0
    %639 = vmatpush.bf16.msra.mxu0 0
    %640 = vmatpush.bf16.msra.mxu0 0
    %641 = vmatpush.bf16.msra.mxu0 %v598
    %642 = vmatmul.bf16.gmra.mxu0 %v619
    %v643 = vpop.f32.mrf.mxu0
    %v644 = vadd.f32 %v631, %v643
    %v645 = vpop.f32.mrf.mxu0
    %646 = vdwg.mxu0
    %647 = vmatpush.bf16.msra.mxu0 %v597
    %648 = vmatpush.bf16.msra.mxu0 %v595
    %649 = vmatpush.bf16.msra.mxu0 %v593
    %650 = vmatpush.bf16.msra.mxu0 %v591
    %651 = vmatpush.bf16.msra.mxu0 %v589
    %652 = vmatpush.bf16.msra.mxu0 %v587
    %653 = vmatpush.bf16.msra.mxu0 %v585
    %654 = vmatpush.bf16.msra.mxu0 %v583
    %655 = vmatmul.bf16.gmra.mxu0 %v466
    %v656 = vpop.f32.mrf.mxu0
    %v657 = vadd.f32 %v525, %v656
    %v658 = vpop.f32.mrf.mxu0
    %659 = vdwg.mxu0
    %660 = vmatpush.bf16.msra.mxu0 0
    %661 = vmatpush.bf16.msra.mxu0 0
    %662 = vmatpush.bf16.msra.mxu0 0
    %663 = vmatpush.bf16.msra.mxu0 0
    %664 = vmatpush.bf16.msra.mxu0 0
    %665 = vmatpush.bf16.msra.mxu0 0
    %666 = vmatpush.bf16.msra.mxu0 0
    %667 = vmatpush.bf16.msra.mxu0 %v599
    %668 = vmatmul.bf16.gmra.mxu0 %v619
    %v669 = vpop.f32.mrf.mxu0
    %v670 = vadd.f32 %v657, %v669
    %v671 = vpop.f32.mrf.mxu0
    %672 = vdwg.mxu0
    %v673 = vld [vmem:[%s7] sm:$0x3]
    %v675 = vperm.slane %v673, 0
    %v676 = vperm.slane %v673, 1
    %v679 = vadd.f32 %v644, %v675
    %v680 = vadd.f32 %v670, %v676
    %v681 = vmul.f32 %v679, 0.01
    %v682 = vmul.f32 %v680, 0.01
    %v683 = vmax.f32 %v679, %v681
    %v684 = vmax.f32 %v680, %v682
    %v685 = vpack.c.bf16 %v683, %v683
    %v686 = vpack.c.bf16 %v684, %v684
    %v687 = vld [vmem:[%s8] sm:$0xff]
    %v688 = vld [vmem:[%s8 + $0x8] sm:$0xff]
    %v689 = vld [vmem:[%s8 + $0x10] sm:$0xff]
    %v690 = vld [vmem:[%s8 + $0x18] sm:$0xff]
    %v691 = vld [vmem:[%s8 + $0x20] sm:$0xff]
    %v692 = vld [vmem:[%s8 + $0x28] sm:$0xff]
    %v693 = vld [vmem:[%s8 + $0x30] sm:$0xff]
    %v694 = vld [vmem:[%s8 + $0x38] sm:$0xff]
    %v695 = vld [vmem:[%s8 + $0x40] sm:$0xff]
    %v696 = vld [vmem:[%s8 + $0x48] sm:$0xff]
    %v697 = vld [vmem:[%s8 + $0x50] sm:$0xff]
    %v698 = vld [vmem:[%s8 + $0x58] sm:$0xff]
    %v699 = vld [vmem:[%s8 + $0x60] sm:$0xff]
    %v700 = vld [vmem:[%s8 + $0x68] sm:$0xff]
    %v701 = vld [vmem:[%s8 + $0x70] sm:$0xff]
    %v702 = vld [vmem:[%s8 + $0x78] sm:$0xff]
    %v703 = vld [vmem:[%s8 + $0x80] sm:$0xff]
    %v704 = vld [vmem:[%s8 + $0x88] sm:$0xff]
    %v705 = vld [vmem:[%s8 + $0x90] sm:$0xff]
    %v706 = vld [vmem:[%s8 + $0x98] sm:$0xff]
    %v707 = vld [vmem:[%s8 + $0xa0] sm:$0xff]
    %v708 = vld [vmem:[%s8 + $0xa8] sm:$0xff]
    %v709 = vld [vmem:[%s8 + $0xb0] sm:$0xff]
    %v710 = vld [vmem:[%s8 + $0xb8] sm:$0xff]
    %v711 = vld [vmem:[%s8 + $0xc0] sm:$0xff]
    %v712 = vld [vmem:[%s8 + $0xc8] sm:$0xff]
    %v713 = vld [vmem:[%s8 + $0xd0] sm:$0xff]
    %v714 = vld [vmem:[%s8 + $0xd8] sm:$0xff]
    %v715 = vld [vmem:[%s8 + $0xe0] sm:$0xff]
    %v716 = vld [vmem:[%s8 + $0xe8] sm:$0xff]
    %v717 = vld [vmem:[%s8 + $0xf0] sm:$0xff]
    %v718 = vld [vmem:[%s8 + $0xf8] sm:$0xff]
    %v719 = vld [vmem:[#allocation7] sm:$0x3]
    %v721 = vperm.slane %v719, 0
    %v722 = vperm.slane %v719, 1
    %v757 = vunpack.c.l.b16 %v687
    %v758 = vunpack.c.h.b16 %v687
    %v759 = vunpack.c.l.b16 %v688
    %v760 = vunpack.c.h.b16 %v688
    %v761 = vunpack.c.l.b16 %v689
    %v762 = vunpack.c.h.b16 %v689
    %v763 = vunpack.c.l.b16 %v690
    %v764 = vunpack.c.h.b16 %v690
    %v765 = vunpack.c.l.b16 %v691
    %v766 = vunpack.c.h.b16 %v691
    %v767 = vunpack.c.l.b16 %v692
    %v768 = vunpack.c.h.b16 %v692
    %v769 = vunpack.c.l.b16 %v693
    %v770 = vunpack.c.h.b16 %v693
    %v771 = vunpack.c.l.b16 %v694
    %v772 = vunpack.c.h.b16 %v694
    %v773 = vunpack.c.l.b16 %v695
    %v774 = vunpack.c.h.b16 %v695
    %v775 = vunpack.c.l.b16 %v696
    %v776 = vunpack.c.h.b16 %v696
    %v777 = vunpack.c.l.b16 %v697
    %v778 = vunpack.c.h.b16 %v697
    %v779 = vunpack.c.l.b16 %v698
    %v780 = vunpack.c.h.b16 %v698
    %v781 = vunpack.c.l.b16 %v699
    %v782 = vunpack.c.h.b16 %v699
    %v783 = vunpack.c.l.b16 %v700
    %v784 = vunpack.c.h.b16 %v700
    %v785 = vunpack.c.l.b16 %v701
    %v786 = vunpack.c.h.b16 %v701
    %v787 = vunpack.c.l.b16 %v702
    %v788 = vunpack.c.h.b16 %v702
    %v789 = vunpack.c.l.b16 %v703
    %v790 = vunpack.c.h.b16 %v703
    %v791 = vunpack.c.l.b16 %v704
    %v792 = vunpack.c.h.b16 %v704
    %v793 = vunpack.c.l.b16 %v705
    %v794 = vunpack.c.h.b16 %v705
    %v795 = vunpack.c.l.b16 %v706
    %v796 = vunpack.c.h.b16 %v706
    %v797 = vunpack.c.l.b16 %v707
    %v798 = vunpack.c.h.b16 %v707
    %v799 = vunpack.c.l.b16 %v708
    %v800 = vunpack.c.h.b16 %v708
    %v801 = vunpack.c.l.b16 %v709
    %v802 = vunpack.c.h.b16 %v709
    %v803 = vunpack.c.l.b16 %v710
    %v804 = vunpack.c.h.b16 %v710
    %v805 = vunpack.c.l.b16 %v711
    %v806 = vunpack.c.h.b16 %v711
    %v807 = vunpack.c.l.b16 %v712
    %v808 = vunpack.c.h.b16 %v712
    %v809 = vunpack.c.l.b16 %v713
    %v810 = vunpack.c.h.b16 %v713
    %v811 = vunpack.c.l.b16 %v714
    %v812 = vunpack.c.h.b16 %v714
    %v813 = vunpack.c.l.b16 %v715
    %v814 = vunpack.c.h.b16 %v715
    %v815 = vunpack.c.l.b16 %v716
    %v816 = vunpack.c.h.b16 %v716
    %v817 = vunpack.c.l.b16 %v717
    %v818 = vunpack.c.h.b16 %v717
    %v819 = vunpack.c.l.b16 %v718
    %v820 = vunpack.c.h.b16 %v718
    %v821 = vpack.c.b16 %v759, %v757
    %v822 = vpack.c.b16 %v760, %v758
    %v823 = vpack.c.b16 %v763, %v761
    %v824 = vpack.c.b16 %v764, %v762
    %v825 = vpack.c.b16 %v767, %v765
    %v826 = vpack.c.b16 %v768, %v766
    %v827 = vpack.c.b16 %v771, %v769
    %v828 = vpack.c.b16 %v772, %v770
    %v829 = vpack.c.b16 %v775, %v773
    %v830 = vpack.c.b16 %v776, %v774
    %v831 = vpack.c.b16 %v779, %v777
    %v832 = vpack.c.b16 %v780, %v778
    %v833 = vpack.c.b16 %v783, %v781
    %v834 = vpack.c.b16 %v784, %v782
    %v835 = vpack.c.b16 %v787, %v785
    %v836 = vpack.c.b16 %v788, %v786
    %v837 = vpack.c.b16 %v791, %v789
    %v838 = vpack.c.b16 %v792, %v790
    %v839 = vpack.c.b16 %v795, %v793
    %v840 = vpack.c.b16 %v796, %v794
    %v841 = vpack.c.b16 %v799, %v797
    %v842 = vpack.c.b16 %v800, %v798
    %v843 = vpack.c.b16 %v803, %v801
    %v844 = vpack.c.b16 %v804, %v802
    %v845 = vpack.c.b16 %v807, %v805
    %v846 = vpack.c.b16 %v808, %v806
    %v847 = vpack.c.b16 %v811, %v809
    %v848 = vpack.c.b16 %v812, %v810
    %v849 = vpack.c.b16 %v815, %v813
    %v850 = vpack.c.b16 %v816, %v814
    %v851 = vpack.c.b16 %v819, %v817
    %v852 = vpack.c.b16 %v820, %v818
    %885 = vmatpush.bf16.msra.mxu0 %v835
    %886 = vmatpush.bf16.msra.mxu0 %v833
    %887 = vmatpush.bf16.msra.mxu0 %v831
    %888 = vmatpush.bf16.msra.mxu0 %v829
    %889 = vmatpush.bf16.msra.mxu0 %v827
    %890 = vmatpush.bf16.msra.mxu0 %v825
    %891 = vmatpush.bf16.msra.mxu0 %v823
    %892 = vmatpush.bf16.msra.mxu0 %v821
    %893 = vmatmul.bf16.gmra.mxu0 %v685
    %v894 = vpop.f32.mrf.mxu0
    %v895 = vadd.f32 %v721, %v894
    %v896 = vpop.f32.mrf.mxu0
    %897 = vdwg.mxu0
    %898 = vmatpush.bf16.msra.mxu0 %v851
    %899 = vmatpush.bf16.msra.mxu0 %v849
    %900 = vmatpush.bf16.msra.mxu0 %v847
    %901 = vmatpush.bf16.msra.mxu0 %v845
    %902 = vmatpush.bf16.msra.mxu0 %v843
    %903 = vmatpush.bf16.msra.mxu0 %v841
    %904 = vmatpush.bf16.msra.mxu0 %v839
    %905 = vmatpush.bf16.msra.mxu0 %v837
    %906 = vmatmul.bf16.gmra.mxu0 %v686
    %v907 = vpop.f32.mrf.mxu0
    %v908 = vadd.f32 %v895, %v907
    %v909 = vpop.f32.mrf.mxu0
    %910 = vdwg.mxu0
    %911 = vmatpush.bf16.msra.mxu0 %v836
    %912 = vmatpush.bf16.msra.mxu0 %v834
    %913 = vmatpush.bf16.msra.mxu0 %v832
    %914 = vmatpush.bf16.msra.mxu0 %v830
    %915 = vmatpush.bf16.msra.mxu0 %v828
    %916 = vmatpush.bf16.msra.mxu0 %v826
    %917 = vmatpush.bf16.msra.mxu0 %v824
    %918 = vmatpush.bf16.msra.mxu0 %v822
    %919 = vmatmul.bf16.gmra.mxu0 %v685
    %v920 = vpop.f32.mrf.mxu0
    %v921 = vadd.f32 %v722, %v920
    %v922 = vpop.f32.mrf.mxu0
    %923 = vdwg.mxu0
    %924 = vmatpush.bf16.msra.mxu0 %v852
    %925 = vmatpush.bf16.msra.mxu0 %v850
    %926 = vmatpush.bf16.msra.mxu0 %v848
    %927 = vmatpush.bf16.msra.mxu0 %v846
    %928 = vmatpush.bf16.msra.mxu0 %v844
    %929 = vmatpush.bf16.msra.mxu0 %v842
    %930 = vmatpush.bf16.msra.mxu0 %v840
    %931 = vmatpush.bf16.msra.mxu0 %v838
    %932 = vmatmul.bf16.gmra.mxu0 %v686
    %v933 = vpop.f32.mrf.mxu0
    %v934 = vadd.f32 %v921, %v933
    %v935 = vpop.f32.mrf.mxu0
    %936 = vdwg.mxu0
    %v937 = vmul.f32 %v908, 0.01
    %v938 = vmul.f32 %v934, 0.01
    %v939 = vmax.f32 %v908, %v937
    %v940 = vmax.f32 %v934, %v938
    %v941 = vpack.c.bf16 %v939, %v939
    %v942 = vpack.c.bf16 %v940, %v940
    %s943 = scalar_lea.vmem %s8, 256
    %v944 = vld [vmem:[%s943] sm:$0xff]
    %v945 = vld [vmem:[%s943 + $0x8] sm:$0xff]
    %v946 = vld [vmem:[%s943 + $0x10] sm:$0xff]
    %v947 = vld [vmem:[%s943 + $0x18] sm:$0xff]
    %v948 = vld [vmem:[%s943 + $0x20] sm:$0xff]
    %v949 = vld [vmem:[%s943 + $0x28] sm:$0xff]
    %v950 = vld [vmem:[%s943 + $0x30] sm:$0xff]
    %v951 = vld [vmem:[%s943 + $0x38] sm:$0xff]
    %v952 = vld [vmem:[%s943 + $0x40] sm:$0xff]
    %v953 = vld [vmem:[%s943 + $0x48] sm:$0xff]
    %v954 = vld [vmem:[%s943 + $0x50] sm:$0xff]
    %v955 = vld [vmem:[%s943 + $0x58] sm:$0xff]
    %v956 = vld [vmem:[%s943 + $0x60] sm:$0xff]
    %v957 = vld [vmem:[%s943 + $0x68] sm:$0xff]
    %v958 = vld [vmem:[%s943 + $0x70] sm:$0xff]
    %v959 = vld [vmem:[%s943 + $0x78] sm:$0xff]
    %v960 = vld [vmem:[%s943 + $0x80] sm:$0xff]
    %v961 = vld [vmem:[%s943 + $0x88] sm:$0xff]
    %v962 = vld [vmem:[%s943 + $0x90] sm:$0xff]
    %v963 = vld [vmem:[%s943 + $0x98] sm:$0xff]
    %v964 = vld [vmem:[%s943 + $0xa0] sm:$0xff]
    %v965 = vld [vmem:[%s943 + $0xa8] sm:$0xff]
    %v966 = vld [vmem:[%s943 + $0xb0] sm:$0xff]
    %v967 = vld [vmem:[%s943 + $0xb8] sm:$0xff]
    %v968 = vld [vmem:[%s943 + $0xc0] sm:$0xff]
    %v969 = vld [vmem:[%s943 + $0xc8] sm:$0xff]
    %v970 = vld [vmem:[%s943 + $0xd0] sm:$0xff]
    %v971 = vld [vmem:[%s943 + $0xd8] sm:$0xff]
    %v972 = vld [vmem:[%s943 + $0xe0] sm:$0xff]
    %v973 = vld [vmem:[%s943 + $0xe8] sm:$0xff]
    %v974 = vld [vmem:[%s943 + $0xf0] sm:$0xff]
    %v975 = vld [vmem:[%s943 + $0xf8] sm:$0xff]
    %s976 = scalar_lea.vmem [#allocation7], 2
    %v977 = vld [vmem:[%s976] sm:$0x3]
    %v979 = vperm.slane %v977, 0
    %v980 = vperm.slane %v977, 1
    %v1015 = vunpack.c.l.b16 %v944
    %v1016 = vunpack.c.h.b16 %v944
    %v1017 = vunpack.c.l.b16 %v945
    %v1018 = vunpack.c.h.b16 %v945
    %v1019 = vunpack.c.l.b16 %v946
    %v1020 = vunpack.c.h.b16 %v946
    %v1021 = vunpack.c.l.b16 %v947
    %v1022 = vunpack.c.h.b16 %v947
    %v1023 = vunpack.c.l.b16 %v948
    %v1024 = vunpack.c.h.b16 %v948
    %v1025 = vunpack.c.l.b16 %v949
    %v1026 = vunpack.c.h.b16 %v949
    %v1027 = vunpack.c.l.b16 %v950
    %v1028 = vunpack.c.h.b16 %v950
    %v1029 = vunpack.c.l.b16 %v951
    %v1030 = vunpack.c.h.b16 %v951
    %v1031 = vunpack.c.l.b16 %v952
    %v1032 = vunpack.c.h.b16 %v952
    %v1033 = vunpack.c.l.b16 %v953
    %v1034 = vunpack.c.h.b16 %v953
    %v1035 = vunpack.c.l.b16 %v954
    %v1036 = vunpack.c.h.b16 %v954
    %v1037 = vunpack.c.l.b16 %v955
    %v1038 = vunpack.c.h.b16 %v955
    %v1039 = vunpack.c.l.b16 %v956
    %v1040 = vunpack.c.h.b16 %v956
    %v1041 = vunpack.c.l.b16 %v957
    %v1042 = vunpack.c.h.b16 %v957
    %v1043 = vunpack.c.l.b16 %v958
    %v1044 = vunpack.c.h.b16 %v958
    %v1045 = vunpack.c.l.b16 %v959
    %v1046 = vunpack.c.h.b16 %v959
    %v1047 = vunpack.c.l.b16 %v960
    %v1048 = vunpack.c.h.b16 %v960
    %v1049 = vunpack.c.l.b16 %v961
    %v1050 = vunpack.c.h.b16 %v961
    %v1051 = vunpack.c.l.b16 %v962
    %v1052 = vunpack.c.h.b16 %v962
    %v1053 = vunpack.c.l.b16 %v963
    %v1054 = vunpack.c.h.b16 %v963
    %v1055 = vunpack.c.l.b16 %v964
    %v1056 = vunpack.c.h.b16 %v964
    %v1057 = vunpack.c.l.b16 %v965
    %v1058 = vunpack.c.h.b16 %v965
    %v1059 = vunpack.c.l.b16 %v966
    %v1060 = vunpack.c.h.b16 %v966
    %v1061 = vunpack.c.l.b16 %v967
    %v1062 = vunpack.c.h.b16 %v967
    %v1063 = vunpack.c.l.b16 %v968
    %v1064 = vunpack.c.h.b16 %v968
    %v1065 = vunpack.c.l.b16 %v969
    %v1066 = vunpack.c.h.b16 %v969
    %v1067 = vunpack.c.l.b16 %v970
    %v1068 = vunpack.c.h.b16 %v970
    %v1069 = vunpack.c.l.b16 %v971
    %v1070 = vunpack.c.h.b16 %v971
    %v1071 = vunpack.c.l.b16 %v972
    %v1072 = vunpack.c.h.b16 %v972
    %v1073 = vunpack.c.l.b16 %v973
    %v1074 = vunpack.c.h.b16 %v973
    %v1075 = vunpack.c.l.b16 %v974
    %v1076 = vunpack.c.h.b16 %v974
    %v1077 = vunpack.c.l.b16 %v975
    %v1078 = vunpack.c.h.b16 %v975
    %v1079 = vpack.c.b16 %v1017, %v1015
    %v1080 = vpack.c.b16 %v1018, %v1016
    %v1081 = vpack.c.b16 %v1021, %v1019
    %v1082 = vpack.c.b16 %v1022, %v1020
    %v1083 = vpack.c.b16 %v1025, %v1023
    %v1084 = vpack.c.b16 %v1026, %v1024
    %v1085 = vpack.c.b16 %v1029, %v1027
    %v1086 = vpack.c.b16 %v1030, %v1028
    %v1087 = vpack.c.b16 %v1033, %v1031
    %v1088 = vpack.c.b16 %v1034, %v1032
    %v1089 = vpack.c.b16 %v1037, %v1035
    %v1090 = vpack.c.b16 %v1038, %v1036
    %v1091 = vpack.c.b16 %v1041, %v1039
    %v1092 = vpack.c.b16 %v1042, %v1040
    %v1093 = vpack.c.b16 %v1045, %v1043
    %v1094 = vpack.c.b16 %v1046, %v1044
    %v1095 = vpack.c.b16 %v1049, %v1047
    %v1096 = vpack.c.b16 %v1050, %v1048
    %v1097 = vpack.c.b16 %v1053, %v1051
    %v1098 = vpack.c.b16 %v1054, %v1052
    %v1099 = vpack.c.b16 %v1057, %v1055
    %v1100 = vpack.c.b16 %v1058, %v1056
    %v1101 = vpack.c.b16 %v1061, %v1059
    %v1102 = vpack.c.b16 %v1062, %v1060
    %v1103 = vpack.c.b16 %v1065, %v1063
    %v1104 = vpack.c.b16 %v1066, %v1064
    %v1105 = vpack.c.b16 %v1069, %v1067
    %v1106 = vpack.c.b16 %v1070, %v1068
    %v1107 = vpack.c.b16 %v1073, %v1071
    %v1108 = vpack.c.b16 %v1074, %v1072
    %v1109 = vpack.c.b16 %v1077, %v1075
    %v1110 = vpack.c.b16 %v1078, %v1076
    %1143 = vmatpush.bf16.msra.mxu0 %v1093
    %1144 = vmatpush.bf16.msra.mxu0 %v1091
    %1145 = vmatpush.bf16.msra.mxu0 %v1089
    %1146 = vmatpush.bf16.msra.mxu0 %v1087
    %1147 = vmatpush.bf16.msra.mxu0 %v1085
    %1148 = vmatpush.bf16.msra.mxu0 %v1083
    %1149 = vmatpush.bf16.msra.mxu0 %v1081
    %1150 = vmatpush.bf16.msra.mxu0 %v1079
    %1151 = vmatmul.bf16.gmra.mxu0 %v941
    %v1152 = vpop.f32.mrf.mxu0
    %v1153 = vadd.f32 %v979, %v1152
    %v1154 = vpop.f32.mrf.mxu0
    %1155 = vdwg.mxu0
    %1156 = vmatpush.bf16.msra.mxu0 %v1109
    %1157 = vmatpush.bf16.msra.mxu0 %v1107
    %1158 = vmatpush.bf16.msra.mxu0 %v1105
    %1159 = vmatpush.bf16.msra.mxu0 %v1103
    %1160 = vmatpush.bf16.msra.mxu0 %v1101
    %1161 = vmatpush.bf16.msra.mxu0 %v1099
    %1162 = vmatpush.bf16.msra.mxu0 %v1097
    %1163 = vmatpush.bf16.msra.mxu0 %v1095
    %1164 = vmatmul.bf16.gmra.mxu0 %v942
    %v1165 = vpop.f32.mrf.mxu0
    %v1166 = vadd.f32 %v1153, %v1165
    %v1167 = vpop.f32.mrf.mxu0
    %1168 = vdwg.mxu0
    %1169 = vmatpush.bf16.msra.mxu0 %v1094
    %1170 = vmatpush.bf16.msra.mxu0 %v1092
    %1171 = vmatpush.bf16.msra.mxu0 %v1090
    %1172 = vmatpush.bf16.msra.mxu0 %v1088
    %1173 = vmatpush.bf16.msra.mxu0 %v1086
    %1174 = vmatpush.bf16.msra.mxu0 %v1084
    %1175 = vmatpush.bf16.msra.mxu0 %v1082
    %1176 = vmatpush.bf16.msra.mxu0 %v1080
    %1177 = vmatmul.bf16.gmra.mxu0 %v941
    %v1178 = vpop.f32.mrf.mxu0
    %v1179 = vadd.f32 %v980, %v1178
    %v1180 = vpop.f32.mrf.mxu0
    %1181 = vdwg.mxu0
    %1182 = vmatpush.bf16.msra.mxu0 %v1110
    %1183 = vmatpush.bf16.msra.mxu0 %v1108
    %1184 = vmatpush.bf16.msra.mxu0 %v1106
    %1185 = vmatpush.bf16.msra.mxu0 %v1104
    %1186 = vmatpush.bf16.msra.mxu0 %v1102
    %1187 = vmatpush.bf16.msra.mxu0 %v1100
    %1188 = vmatpush.bf16.msra.mxu0 %v1098
    %1189 = vmatpush.bf16.msra.mxu0 %v1096
    %1190 = vmatmul.bf16.gmra.mxu0 %v942
    %v1191 = vpop.f32.mrf.mxu0
    %v1192 = vadd.f32 %v1179, %v1191
    %v1193 = vpop.f32.mrf.mxu0
    %1194 = vdwg.mxu0
    %v1195 = vmul.f32 %v1166, 0.01
    %v1196 = vmul.f32 %v1192, 0.01
    %v1197 = vmax.f32 %v1166, %v1195
    %v1198 = vmax.f32 %v1192, %v1196
    %v1199 = vpack.c.bf16 %v1197, %v1197
    %v1200 = vpack.c.bf16 %v1198, %v1198
    %s1201 = scalar_lea.vmem %s8, 512
    %v1202 = vld [vmem:[%s1201] sm:$0xff]
    %v1203 = vld [vmem:[%s1201 + $0x8] sm:$0xff]
    %v1204 = vld [vmem:[%s1201 + $0x10] sm:$0xff]
    %v1205 = vld [vmem:[%s1201 + $0x18] sm:$0xff]
    %v1206 = vld [vmem:[%s1201 + $0x20] sm:$0xff]
    %v1207 = vld [vmem:[%s1201 + $0x28] sm:$0xff]
    %v1208 = vld [vmem:[%s1201 + $0x30] sm:$0xff]
    %v1209 = vld [vmem:[%s1201 + $0x38] sm:$0xff]
    %v1210 = vld [vmem:[%s1201 + $0x40] sm:$0xff]
    %v1211 = vld [vmem:[%s1201 + $0x48] sm:$0xff]
    %v1212 = vld [vmem:[%s1201 + $0x50] sm:$0xff]
    %v1213 = vld [vmem:[%s1201 + $0x58] sm:$0xff]
    %v1214 = vld [vmem:[%s1201 + $0x60] sm:$0xff]
    %v1215 = vld [vmem:[%s1201 + $0x68] sm:$0xff]
    %v1216 = vld [vmem:[%s1201 + $0x70] sm:$0xff]
    %v1217 = vld [vmem:[%s1201 + $0x78] sm:$0xff]
    %v1218 = vld [vmem:[%s1201 + $0x80] sm:$0xff]
    %v1219 = vld [vmem:[%s1201 + $0x88] sm:$0xff]
    %v1220 = vld [vmem:[%s1201 + $0x90] sm:$0xff]
    %v1221 = vld [vmem:[%s1201 + $0x98] sm:$0xff]
    %v1222 = vld [vmem:[%s1201 + $0xa0] sm:$0xff]
    %v1223 = vld [vmem:[%s1201 + $0xa8] sm:$0xff]
    %v1224 = vld [vmem:[%s1201 + $0xb0] sm:$0xff]
    %v1225 = vld [vmem:[%s1201 + $0xb8] sm:$0xff]
    %v1226 = vld [vmem:[%s1201 + $0xc0] sm:$0xff]
    %v1227 = vld [vmem:[%s1201 + $0xc8] sm:$0xff]
    %v1228 = vld [vmem:[%s1201 + $0xd0] sm:$0xff]
    %v1229 = vld [vmem:[%s1201 + $0xd8] sm:$0xff]
    %v1230 = vld [vmem:[%s1201 + $0xe0] sm:$0xff]
    %v1231 = vld [vmem:[%s1201 + $0xe8] sm:$0xff]
    %v1232 = vld [vmem:[%s1201 + $0xf0] sm:$0xff]
    %v1233 = vld [vmem:[%s1201 + $0xf8] sm:$0xff]
    %s1234 = scalar_lea.vmem [#allocation7], 4
    %v1235 = vld [vmem:[%s1234] sm:$0x3]
    %v1237 = vperm.slane %v1235, 0
    %v1238 = vperm.slane %v1235, 1
    %v1273 = vunpack.c.l.b16 %v1202
    %v1274 = vunpack.c.h.b16 %v1202
    %v1275 = vunpack.c.l.b16 %v1203
    %v1276 = vunpack.c.h.b16 %v1203
    %v1277 = vunpack.c.l.b16 %v1204
    %v1278 = vunpack.c.h.b16 %v1204
    %v1279 = vunpack.c.l.b16 %v1205
    %v1280 = vunpack.c.h.b16 %v1205
    %v1281 = vunpack.c.l.b16 %v1206
    %v1282 = vunpack.c.h.b16 %v1206
    %v1283 = vunpack.c.l.b16 %v1207
    %v1284 = vunpack.c.h.b16 %v1207
    %v1285 = vunpack.c.l.b16 %v1208
    %v1286 = vunpack.c.h.b16 %v1208
    %v1287 = vunpack.c.l.b16 %v1209
    %v1288 = vunpack.c.h.b16 %v1209
    %v1289 = vunpack.c.l.b16 %v1210
    %v1290 = vunpack.c.h.b16 %v1210
    %v1291 = vunpack.c.l.b16 %v1211
    %v1292 = vunpack.c.h.b16 %v1211
    %v1293 = vunpack.c.l.b16 %v1212
    %v1294 = vunpack.c.h.b16 %v1212
    %v1295 = vunpack.c.l.b16 %v1213
    %v1296 = vunpack.c.h.b16 %v1213
    %v1297 = vunpack.c.l.b16 %v1214
    %v1298 = vunpack.c.h.b16 %v1214
    %v1299 = vunpack.c.l.b16 %v1215
    %v1300 = vunpack.c.h.b16 %v1215
    %v1301 = vunpack.c.l.b16 %v1216
    %v1302 = vunpack.c.h.b16 %v1216
    %v1303 = vunpack.c.l.b16 %v1217
    %v1304 = vunpack.c.h.b16 %v1217
    %v1305 = vunpack.c.l.b16 %v1218
    %v1306 = vunpack.c.h.b16 %v1218
    %v1307 = vunpack.c.l.b16 %v1219
    %v1308 = vunpack.c.h.b16 %v1219
    %v1309 = vunpack.c.l.b16 %v1220
    %v1310 = vunpack.c.h.b16 %v1220
    %v1311 = vunpack.c.l.b16 %v1221
    %v1312 = vunpack.c.h.b16 %v1221
    %v1313 = vunpack.c.l.b16 %v1222
    %v1314 = vunpack.c.h.b16 %v1222
    %v1315 = vunpack.c.l.b16 %v1223
    %v1316 = vunpack.c.h.b16 %v1223
    %v1317 = vunpack.c.l.b16 %v1224
    %v1318 = vunpack.c.h.b16 %v1224
    %v1319 = vunpack.c.l.b16 %v1225
    %v1320 = vunpack.c.h.b16 %v1225
    %v1321 = vunpack.c.l.b16 %v1226
    %v1322 = vunpack.c.h.b16 %v1226
    %v1323 = vunpack.c.l.b16 %v1227
    %v1324 = vunpack.c.h.b16 %v1227
    %v1325 = vunpack.c.l.b16 %v1228
    %v1326 = vunpack.c.h.b16 %v1228
    %v1327 = vunpack.c.l.b16 %v1229
    %v1328 = vunpack.c.h.b16 %v1229
    %v1329 = vunpack.c.l.b16 %v1230
    %v1330 = vunpack.c.h.b16 %v1230
    %v1331 = vunpack.c.l.b16 %v1231
    %v1332 = vunpack.c.h.b16 %v1231
    %v1333 = vunpack.c.l.b16 %v1232
    %v1334 = vunpack.c.h.b16 %v1232
    %v1335 = vunpack.c.l.b16 %v1233
    %v1336 = vunpack.c.h.b16 %v1233
    %v1337 = vpack.c.b16 %v1275, %v1273
    %v1338 = vpack.c.b16 %v1276, %v1274
    %v1339 = vpack.c.b16 %v1279, %v1277
    %v1340 = vpack.c.b16 %v1280, %v1278
    %v1341 = vpack.c.b16 %v1283, %v1281
    %v1342 = vpack.c.b16 %v1284, %v1282
    %v1343 = vpack.c.b16 %v1287, %v1285
    %v1344 = vpack.c.b16 %v1288, %v1286
    %v1345 = vpack.c.b16 %v1291, %v1289
    %v1346 = vpack.c.b16 %v1292, %v1290
    %v1347 = vpack.c.b16 %v1295, %v1293
    %v1348 = vpack.c.b16 %v1296, %v1294
    %v1349 = vpack.c.b16 %v1299, %v1297
    %v1350 = vpack.c.b16 %v1300, %v1298
    %v1351 = vpack.c.b16 %v1303, %v1301
    %v1352 = vpack.c.b16 %v1304, %v1302
    %v1353 = vpack.c.b16 %v1307, %v1305
    %v1354 = vpack.c.b16 %v1308, %v1306
    %v1355 = vpack.c.b16 %v1311, %v1309
    %v1356 = vpack.c.b16 %v1312, %v1310
    %v1357 = vpack.c.b16 %v1315, %v1313
    %v1358 = vpack.c.b16 %v1316, %v1314
    %v1359 = vpack.c.b16 %v1319, %v1317
    %v1360 = vpack.c.b16 %v1320, %v1318
    %v1361 = vpack.c.b16 %v1323, %v1321
    %v1362 = vpack.c.b16 %v1324, %v1322
    %v1363 = vpack.c.b16 %v1327, %v1325
    %v1364 = vpack.c.b16 %v1328, %v1326
    %v1365 = vpack.c.b16 %v1331, %v1329
    %v1366 = vpack.c.b16 %v1332, %v1330
    %v1367 = vpack.c.b16 %v1335, %v1333
    %v1368 = vpack.c.b16 %v1336, %v1334
    %1401 = vmatpush.bf16.msra.mxu0 %v1351
    %1402 = vmatpush.bf16.msra.mxu0 %v1349
    %1403 = vmatpush.bf16.msra.mxu0 %v1347
    %1404 = vmatpush.bf16.msra.mxu0 %v1345
    %1405 = vmatpush.bf16.msra.mxu0 %v1343
    %1406 = vmatpush.bf16.msra.mxu0 %v1341
    %1407 = vmatpush.bf16.msra.mxu0 %v1339
    %1408 = vmatpush.bf16.msra.mxu0 %v1337
    %1409 = vmatmul.bf16.gmra.mxu0 %v1199
    %v1410 = vpop.f32.mrf.mxu0
    %v1411 = vadd.f32 %v1237, %v1410
    %v1412 = vpop.f32.mrf.mxu0
    %1413 = vdwg.mxu0
    %1414 = vmatpush.bf16.msra.mxu0 %v1367
    %1415 = vmatpush.bf16.msra.mxu0 %v1365
    %1416 = vmatpush.bf16.msra.mxu0 %v1363
    %1417 = vmatpush.bf16.msra.mxu0 %v1361
    %1418 = vmatpush.bf16.msra.mxu0 %v1359
    %1419 = vmatpush.bf16.msra.mxu0 %v1357
    %1420 = vmatpush.bf16.msra.mxu0 %v1355
    %1421 = vmatpush.bf16.msra.mxu0 %v1353
    %1422 = vmatmul.bf16.gmra.mxu0 %v1200
    %v1423 = vpop.f32.mrf.mxu0
    %v1424 = vadd.f32 %v1411, %v1423
    %v1425 = vpop.f32.mrf.mxu0
    %1426 = vdwg.mxu0
    %1427 = vmatpush.bf16.msra.mxu0 %v1352
    %1428 = vmatpush.bf16.msra.mxu0 %v1350
    %1429 = vmatpush.bf16.msra.mxu0 %v1348
    %1430 = vmatpush.bf16.msra.mxu0 %v1346
    %1431 = vmatpush.bf16.msra.mxu0 %v1344
    %1432 = vmatpush.bf16.msra.mxu0 %v1342
    %1433 = vmatpush.bf16.msra.mxu0 %v1340
    %1434 = vmatpush.bf16.msra.mxu0 %v1338
    %1435 = vmatmul.bf16.gmra.mxu0 %v1199
    %v1436 = vpop.f32.mrf.mxu0
    %v1437 = vadd.f32 %v1238, %v1436
    %v1438 = vpop.f32.mrf.mxu0
    %1439 = vdwg.mxu0
    %1440 = vmatpush.bf16.msra.mxu0 %v1368
    %1441 = vmatpush.bf16.msra.mxu0 %v1366
    %1442 = vmatpush.bf16.msra.mxu0 %v1364
    %1443 = vmatpush.bf16.msra.mxu0 %v1362
    %1444 = vmatpush.bf16.msra.mxu0 %v1360
    %1445 = vmatpush.bf16.msra.mxu0 %v1358
    %1446 = vmatpush.bf16.msra.mxu0 %v1356
    %1447 = vmatpush.bf16.msra.mxu0 %v1354
    %1448 = vmatmul.bf16.gmra.mxu0 %v1200
    %v1449 = vpop.f32.mrf.mxu0
    %v1450 = vadd.f32 %v1437, %v1449
    %v1451 = vpop.f32.mrf.mxu0
    %1452 = vdwg.mxu0
    %v1453 = vmul.f32 %v1424, 0.01
    %v1454 = vmul.f32 %v1450, 0.01
    %v1455 = vmax.f32 %v1424, %v1453
    %v1456 = vmax.f32 %v1450, %v1454
    %v1457 = vpack.c.bf16 %v1455, %v1455
    %v1458 = vpack.c.bf16 %v1456, %v1456
    %s1459 = scalar_lea.vmem %s8, 768
    %v1460 = vld [vmem:[%s1459] sm:$0xff]
    %v1461 = vld [vmem:[%s1459 + $0x8] sm:$0xff]
    %v1462 = vld [vmem:[%s1459 + $0x10] sm:$0xff]
    %v1463 = vld [vmem:[%s1459 + $0x18] sm:$0xff]
    %v1464 = vld [vmem:[%s1459 + $0x20] sm:$0xff]
    %v1465 = vld [vmem:[%s1459 + $0x28] sm:$0xff]
    %v1466 = vld [vmem:[%s1459 + $0x30] sm:$0xff]
    %v1467 = vld [vmem:[%s1459 + $0x38] sm:$0xff]
    %v1468 = vld [vmem:[%s1459 + $0x40] sm:$0xff]
    %v1469 = vld [vmem:[%s1459 + $0x48] sm:$0xff]
    %v1470 = vld [vmem:[%s1459 + $0x50] sm:$0xff]
    %v1471 = vld [vmem:[%s1459 + $0x58] sm:$0xff]
    %v1472 = vld [vmem:[%s1459 + $0x60] sm:$0xff]
    %v1473 = vld [vmem:[%s1459 + $0x68] sm:$0xff]
    %v1474 = vld [vmem:[%s1459 + $0x70] sm:$0xff]
    %v1475 = vld [vmem:[%s1459 + $0x78] sm:$0xff]
    %v1476 = vld [vmem:[%s1459 + $0x80] sm:$0xff]
    %v1477 = vld [vmem:[%s1459 + $0x88] sm:$0xff]
    %v1478 = vld [vmem:[%s1459 + $0x90] sm:$0xff]
    %v1479 = vld [vmem:[%s1459 + $0x98] sm:$0xff]
    %v1480 = vld [vmem:[%s1459 + $0xa0] sm:$0xff]
    %v1481 = vld [vmem:[%s1459 + $0xa8] sm:$0xff]
    %v1482 = vld [vmem:[%s1459 + $0xb0] sm:$0xff]
    %v1483 = vld [vmem:[%s1459 + $0xb8] sm:$0xff]
    %v1484 = vld [vmem:[%s1459 + $0xc0] sm:$0xff]
    %v1485 = vld [vmem:[%s1459 + $0xc8] sm:$0xff]
    %v1486 = vld [vmem:[%s1459 + $0xd0] sm:$0xff]
    %v1487 = vld [vmem:[%s1459 + $0xd8] sm:$0xff]
    %v1488 = vld [vmem:[%s1459 + $0xe0] sm:$0xff]
    %v1489 = vld [vmem:[%s1459 + $0xe8] sm:$0xff]
    %v1490 = vld [vmem:[%s1459 + $0xf0] sm:$0xff]
    %v1491 = vld [vmem:[%s1459 + $0xf8] sm:$0xff]
    %s1492 = scalar_lea.vmem [#allocation7], 6
    %v1493 = vld [vmem:[%s1492] sm:$0x3]
    %v1495 = vperm.slane %v1493, 0
    %v1496 = vperm.slane %v1493, 1
    %v1531 = vunpack.c.l.b16 %v1460
    %v1532 = vunpack.c.h.b16 %v1460
    %v1533 = vunpack.c.l.b16 %v1461
    %v1534 = vunpack.c.h.b16 %v1461
    %v1535 = vunpack.c.l.b16 %v1462
    %v1536 = vunpack.c.h.b16 %v1462
    %v1537 = vunpack.c.l.b16 %v1463
    %v1538 = vunpack.c.h.b16 %v1463
    %v1539 = vunpack.c.l.b16 %v1464
    %v1540 = vunpack.c.h.b16 %v1464
    %v1541 = vunpack.c.l.b16 %v1465
    %v1542 = vunpack.c.h.b16 %v1465
    %v1543 = vunpack.c.l.b16 %v1466
    %v1544 = vunpack.c.h.b16 %v1466
    %v1545 = vunpack.c.l.b16 %v1467
    %v1546 = vunpack.c.h.b16 %v1467
    %v1547 = vunpack.c.l.b16 %v1468
    %v1548 = vunpack.c.h.b16 %v1468
    %v1549 = vunpack.c.l.b16 %v1469
    %v1550 = vunpack.c.h.b16 %v1469
    %v1551 = vunpack.c.l.b16 %v1470
    %v1552 = vunpack.c.h.b16 %v1470
    %v1553 = vunpack.c.l.b16 %v1471
    %v1554 = vunpack.c.h.b16 %v1471
    %v1555 = vunpack.c.l.b16 %v1472
    %v1556 = vunpack.c.h.b16 %v1472
    %v1557 = vunpack.c.l.b16 %v1473
    %v1558 = vunpack.c.h.b16 %v1473
    %v1559 = vunpack.c.l.b16 %v1474
    %v1560 = vunpack.c.h.b16 %v1474
    %v1561 = vunpack.c.l.b16 %v1475
    %v1562 = vunpack.c.h.b16 %v1475
    %v1563 = vunpack.c.l.b16 %v1476
    %v1564 = vunpack.c.h.b16 %v1476
    %v1565 = vunpack.c.l.b16 %v1477
    %v1566 = vunpack.c.h.b16 %v1477
    %v1567 = vunpack.c.l.b16 %v1478
    %v1568 = vunpack.c.h.b16 %v1478
    %v1569 = vunpack.c.l.b16 %v1479
    %v1570 = vunpack.c.h.b16 %v1479
    %v1571 = vunpack.c.l.b16 %v1480
    %v1572 = vunpack.c.h.b16 %v1480
    %v1573 = vunpack.c.l.b16 %v1481
    %v1574 = vunpack.c.h.b16 %v1481
    %v1575 = vunpack.c.l.b16 %v1482
    %v1576 = vunpack.c.h.b16 %v1482
    %v1577 = vunpack.c.l.b16 %v1483
    %v1578 = vunpack.c.h.b16 %v1483
    %v1579 = vunpack.c.l.b16 %v1484
    %v1580 = vunpack.c.h.b16 %v1484
    %v1581 = vunpack.c.l.b16 %v1485
    %v1582 = vunpack.c.h.b16 %v1485
    %v1583 = vunpack.c.l.b16 %v1486
    %v1584 = vunpack.c.h.b16 %v1486
    %v1585 = vunpack.c.l.b16 %v1487
    %v1586 = vunpack.c.h.b16 %v1487
    %v1587 = vunpack.c.l.b16 %v1488
    %v1588 = vunpack.c.h.b16 %v1488
    %v1589 = vunpack.c.l.b16 %v1489
    %v1590 = vunpack.c.h.b16 %v1489
    %v1591 = vunpack.c.l.b16 %v1490
    %v1592 = vunpack.c.h.b16 %v1490
    %v1593 = vunpack.c.l.b16 %v1491
    %v1594 = vunpack.c.h.b16 %v1491
    %v1595 = vpack.c.b16 %v1533, %v1531
    %v1596 = vpack.c.b16 %v1534, %v1532
    %v1597 = vpack.c.b16 %v1537, %v1535
    %v1598 = vpack.c.b16 %v1538, %v1536
    %v1599 = vpack.c.b16 %v1541, %v1539
    %v1600 = vpack.c.b16 %v1542, %v1540
    %v1601 = vpack.c.b16 %v1545, %v1543
    %v1602 = vpack.c.b16 %v1546, %v1544
    %v1603 = vpack.c.b16 %v1549, %v1547
    %v1604 = vpack.c.b16 %v1550, %v1548
    %v1605 = vpack.c.b16 %v1553, %v1551
    %v1606 = vpack.c.b16 %v1554, %v1552
    %v1607 = vpack.c.b16 %v1557, %v1555
    %v1608 = vpack.c.b16 %v1558, %v1556
    %v1609 = vpack.c.b16 %v1561, %v1559
    %v1610 = vpack.c.b16 %v1562, %v1560
    %v1611 = vpack.c.b16 %v1565, %v1563
    %v1612 = vpack.c.b16 %v1566, %v1564
    %v1613 = vpack.c.b16 %v1569, %v1567
    %v1614 = vpack.c.b16 %v1570, %v1568
    %v1615 = vpack.c.b16 %v1573, %v1571
    %v1616 = vpack.c.b16 %v1574, %v1572
    %v1617 = vpack.c.b16 %v1577, %v1575
    %v1618 = vpack.c.b16 %v1578, %v1576
    %v1619 = vpack.c.b16 %v1581, %v1579
    %v1620 = vpack.c.b16 %v1582, %v1580
    %v1621 = vpack.c.b16 %v1585, %v1583
    %v1622 = vpack.c.b16 %v1586, %v1584
    %v1623 = vpack.c.b16 %v1589, %v1587
    %v1624 = vpack.c.b16 %v1590, %v1588
    %v1625 = vpack.c.b16 %v1593, %v1591
    %v1626 = vpack.c.b16 %v1594, %v1592
    %1659 = vmatpush.bf16.msra.mxu0 %v1609
    %1660 = vmatpush.bf16.msra.mxu0 %v1607
    %1661 = vmatpush.bf16.msra.mxu0 %v1605
    %1662 = vmatpush.bf16.msra.mxu0 %v1603
    %1663 = vmatpush.bf16.msra.mxu0 %v1601
    %1664 = vmatpush.bf16.msra.mxu0 %v1599
    %1665 = vmatpush.bf16.msra.mxu0 %v1597
    %1666 = vmatpush.bf16.msra.mxu0 %v1595
    %1667 = vmatmul.bf16.gmra.mxu0 %v1457
    %v1668 = vpop.f32.mrf.mxu0
    %v1669 = vadd.f32 %v1495, %v1668
    %v1670 = vpop.f32.mrf.mxu0
    %1671 = vdwg.mxu0
    %1672 = vmatpush.bf16.msra.mxu0 %v1625
    %1673 = vmatpush.bf16.msra.mxu0 %v1623
    %1674 = vmatpush.bf16.msra.mxu0 %v1621
    %1675 = vmatpush.bf16.msra.mxu0 %v1619
    %1676 = vmatpush.bf16.msra.mxu0 %v1617
    %1677 = vmatpush.bf16.msra.mxu0 %v1615
    %1678 = vmatpush.bf16.msra.mxu0 %v1613
    %1679 = vmatpush.bf16.msra.mxu0 %v1611
    %1680 = vmatmul.bf16.gmra.mxu0 %v1458
    %v1681 = vpop.f32.mrf.mxu0
    %v1682 = vadd.f32 %v1669, %v1681
    %v1683 = vpop.f32.mrf.mxu0
    %1684 = vdwg.mxu0
    %1685 = vmatpush.bf16.msra.mxu0 %v1610
    %1686 = vmatpush.bf16.msra.mxu0 %v1608
    %1687 = vmatpush.bf16.msra.mxu0 %v1606
    %1688 = vmatpush.bf16.msra.mxu0 %v1604
    %1689 = vmatpush.bf16.msra.mxu0 %v1602
    %1690 = vmatpush.bf16.msra.mxu0 %v1600
    %1691 = vmatpush.bf16.msra.mxu0 %v1598
    %1692 = vmatpush.bf16.msra.mxu0 %v1596
    %1693 = vmatmul.bf16.gmra.mxu0 %v1457
    %v1694 = vpop.f32.mrf.mxu0
    %v1695 = vadd.f32 %v1496, %v1694
    %v1696 = vpop.f32.mrf.mxu0
    %1697 = vdwg.mxu0
    %1698 = vmatpush.bf16.msra.mxu0 %v1626
    %1699 = vmatpush.bf16.msra.mxu0 %v1624
    %1700 = vmatpush.bf16.msra.mxu0 %v1622
    %1701 = vmatpush.bf16.msra.mxu0 %v1620
    %1702 = vmatpush.bf16.msra.mxu0 %v1618
    %1703 = vmatpush.bf16.msra.mxu0 %v1616
    %1704 = vmatpush.bf16.msra.mxu0 %v1614
    %1705 = vmatpush.bf16.msra.mxu0 %v1612
    %1706 = vmatmul.bf16.gmra.mxu0 %v1458
    %v1707 = vpop.f32.mrf.mxu0
    %v1708 = vadd.f32 %v1695, %v1707
    %v1709 = vpop.f32.mrf.mxu0
    %1710 = vdwg.mxu0
    %v1711 = vmul.f32 %v1682, 0.01
    %v1712 = vmul.f32 %v1708, 0.01
    %v1713 = vmax.f32 %v1682, %v1711
    %v1714 = vmax.f32 %v1708, %v1712
    %v1715 = vpack.c.bf16 %v1713, %v1713
    %v1716 = vpack.c.bf16 %v1714, %v1714
    %v1717 = vld [vmem:[%s10] sm:$0xf]
    %v1718 = vld [vmem:[%s10 + $0x4] sm:$0xf]
    %v1719 = vld [vmem:[%s10 + $0x8] sm:$0xf]
    %v1720 = vld [vmem:[%s10 + $0xc] sm:$0xf]
    %v1721 = vld [vmem:[%s10 + $0x10] sm:$0xf]
    %v1722 = vld [vmem:[%s10 + $0x14] sm:$0xf]
    %v1723 = vld [vmem:[%s10 + $0x18] sm:$0xf]
    %v1724 = vld [vmem:[%s10 + $0x1c] sm:$0xf]
    %v1725 = vld [vmem:[%s10 + $0x20] sm:$0xf]
    %v1726 = vld [vmem:[%s10 + $0x24] sm:$0xf]
    %v1727 = vld [vmem:[%s10 + $0x28] sm:$0xf]
    %v1728 = vld [vmem:[%s10 + $0x2c] sm:$0xf]
    %v1729 = vld [vmem:[%s10 + $0x30] sm:$0xf]
    %v1730 = vld [vmem:[%s10 + $0x34] sm:$0xf]
    %v1731 = vld [vmem:[%s10 + $0x38] sm:$0xf]
    %v1732 = vld [vmem:[%s10 + $0x3c] sm:$0xf]
    %v1733 = vld [vmem:[%s10 + $0x40] sm:$0xf]
    %v1734 = vld [vmem:[%s10 + $0x44] sm:$0xf]
    %v1735 = vld [vmem:[%s10 + $0x48] sm:$0xf]
    %v1736 = vld [vmem:[%s10 + $0x4c] sm:$0xf]
    %v1737 = vld [vmem:[%s10 + $0x50] sm:$0xf]
    %v1738 = vld [vmem:[%s10 + $0x54] sm:$0xf]
    %v1739 = vld [vmem:[%s10 + $0x58] sm:$0xf]
    %v1740 = vld [vmem:[%s10 + $0x5c] sm:$0xf]
    %v1741 = vld [vmem:[%s10 + $0x60] sm:$0xf]
    %v1742 = vld [vmem:[%s10 + $0x64] sm:$0xf]
    %v1743 = vld [vmem:[%s10 + $0x68] sm:$0xf]
    %v1744 = vld [vmem:[%s10 + $0x6c] sm:$0xf]
    %v1745 = vld [vmem:[%s10 + $0x70] sm:$0xf]
    %v1746 = vld [vmem:[%s10 + $0x74] sm:$0xf]
    %v1747 = vld [vmem:[%s10 + $0x78] sm:$0xf]
    %v1748 = vld [vmem:[%s10 + $0x7c] sm:$0xf]
    %v1749 = vld [vmem:[%s11] sm:$0x1]
    %v1751 = vperm.slane %v1749, 0
    %v1785 = vunpack.c.l.b16 %v1717
    %v1786 = vunpack.c.l.b16 %v1718
    %v1787 = vunpack.c.l.b16 %v1719
    %v1788 = vunpack.c.l.b16 %v1720
    %v1789 = vunpack.c.l.b16 %v1721
    %v1790 = vunpack.c.l.b16 %v1722
    %v1791 = vunpack.c.l.b16 %v1723
    %v1792 = vunpack.c.l.b16 %v1724
    %v1793 = vunpack.c.l.b16 %v1725
    %v1794 = vunpack.c.l.b16 %v1726
    %v1795 = vunpack.c.l.b16 %v1727
    %v1796 = vunpack.c.l.b16 %v1728
    %v1797 = vunpack.c.l.b16 %v1729
    %v1798 = vunpack.c.l.b16 %v1730
    %v1799 = vunpack.c.l.b16 %v1731
    %v1800 = vunpack.c.l.b16 %v1732
    %v1801 = vunpack.c.l.b16 %v1733
    %v1802 = vunpack.c.l.b16 %v1734
    %v1803 = vunpack.c.l.b16 %v1735
    %v1804 = vunpack.c.l.b16 %v1736
    %v1805 = vunpack.c.l.b16 %v1737
    %v1806 = vunpack.c.l.b16 %v1738
    %v1807 = vunpack.c.l.b16 %v1739
    %v1808 = vunpack.c.l.b16 %v1740
    %v1809 = vunpack.c.l.b16 %v1741
    %v1810 = vunpack.c.l.b16 %v1742
    %v1811 = vunpack.c.l.b16 %v1743
    %v1812 = vunpack.c.l.b16 %v1744
    %v1813 = vunpack.c.l.b16 %v1745
    %v1814 = vunpack.c.l.b16 %v1746
    %v1815 = vunpack.c.l.b16 %v1747
    %v1816 = vunpack.c.l.b16 %v1748
    %v1817 = vpack.c.b16 %v1786, %v1785
    %v1818 = vpack.c.b16 %v1788, %v1787
    %v1819 = vpack.c.b16 %v1790, %v1789
    %v1820 = vpack.c.b16 %v1792, %v1791
    %v1821 = vpack.c.b16 %v1794, %v1793
    %v1822 = vpack.c.b16 %v1796, %v1795
    %v1823 = vpack.c.b16 %v1798, %v1797
    %v1824 = vpack.c.b16 %v1800, %v1799
    %v1825 = vpack.c.b16 %v1802, %v1801
    %v1826 = vpack.c.b16 %v1804, %v1803
    %v1827 = vpack.c.b16 %v1806, %v1805
    %v1828 = vpack.c.b16 %v1808, %v1807
    %v1829 = vpack.c.b16 %v1810, %v1809
    %v1830 = vpack.c.b16 %v1812, %v1811
    %v1831 = vpack.c.b16 %v1814, %v1813
    %v1832 = vpack.c.b16 %v1816, %v1815
    %1849 = vmatpush.bf16.msra.mxu0 %v1824
    %1850 = vmatpush.bf16.msra.mxu0 %v1823
    %1851 = vmatpush.bf16.msra.mxu0 %v1822
    %1852 = vmatpush.bf16.msra.mxu0 %v1821
    %1853 = vmatpush.bf16.msra.mxu0 %v1820
    %1854 = vmatpush.bf16.msra.mxu0 %v1819
    %1855 = vmatpush.bf16.msra.mxu0 %v1818
    %1856 = vmatpush.bf16.msra.mxu0 %v1817
    %1857 = vmatmul.bf16.gmra.mxu0 %v1715
    %v1858 = vpop.f32.mrf.mxu0
    %v1859 = vadd.f32 %v1751, %v1858
    %v1860 = vpop.f32.mrf.mxu0
    %1861 = vdwg.mxu0
    %1862 = vmatpush.bf16.msra.mxu0 %v1832
    %1863 = vmatpush.bf16.msra.mxu0 %v1831
    %1864 = vmatpush.bf16.msra.mxu0 %v1830
    %1865 = vmatpush.bf16.msra.mxu0 %v1829
    %1866 = vmatpush.bf16.msra.mxu0 %v1828
    %1867 = vmatpush.bf16.msra.mxu0 %v1827
    %1868 = vmatpush.bf16.msra.mxu0 %v1826
    %1869 = vmatpush.bf16.msra.mxu0 %v1825
    %1870 = vmatmul.bf16.gmra.mxu0 %v1716
    %v1871 = vpop.f32.mrf.mxu0
    %v1872 = vadd.f32 %v1859, %v1871
    %v1873 = vpop.f32.mrf.mxu0
    %1874 = vdwg.mxu0
    %v1875 = vld [vmem:[%s4] sm:$0x1]
    %v1877 = vperm.slane %v1875, 0
    %v1879 = vmul.f32 %v1872, %v1877
    %v1880 = vtanh.pop %v1879
    %v1881 = vmul.f32 %v1880, 0.2
    %v1882 = vld [vmem:[%s3] sm:$0xff]
    %v1883 = vld [vmem:[%s3 + $0x8] sm:$0xff]
    %v1885 = vsel %vm110, %v1881, 0
    %1887 = vmatpush.msra.mxu0 0.0
    %1888 = vmatpush.msra.mxu0 0.0
    %1889 = vmatpush.msra.mxu0 0.0
    %1890 = vmatpush.msra.mxu0 0.0
    %1891 = vmatpush.msra.mxu0 0.0
    %1892 = vmatpush.msra.mxu0 0.0
    %1893 = vmatpush.msra.mxu0 0.0
    %1894 = vmatpush.msra.mxu0 0.0
    %1895 = vmatpush.msra.mxu0 0.0
    %1896 = vmatpush.msra.mxu0 0.0
    %1897 = vmatpush.msra.mxu0 0.0
    %1898 = vmatpush.msra.mxu0 0.0
    %1899 = vmatpush.msra.mxu0 0.0
    %1900 = vmatpush.msra.mxu0 0.0
    %1901 = vmatpush.msra.mxu0 %v1883
    %1902 = vmatpush.msra.mxu0 %v1882
    %1903 = vmatmul.f32.gmra.mxu0 %v1885
    %v1904 = vpop.f32.mrf.mxu0
    %v1905 = vadd.f32 1.0, %v1904
    %1906 = vdwg.mxu0
    %v1907 = vmul.f32 %v329, %v1905
    %v1908 = vld [vmem:[#allocation2] sm:$0xff]
    %v1909 = vld [vmem:[#allocation2 + $0x8] sm:$0xff]
    %v1910 = vmul.f32 %v388, %v1905
    %s1911 = scalar_lea.vmem [#allocation2], 16
    %v1912 = vld [vmem:[%s1911] sm:$0xff]
    %v1913 = vld [vmem:[%s1911 + $0x8] sm:$0xff]
    %v1915 = vsel %vm110, %v1910, 0
    %1917 = vmatpush.msra.mxu0 0.0
    %1918 = vmatpush.msra.mxu0 0.0
    %1919 = vmatpush.msra.mxu0 0.0
    %1920 = vmatpush.msra.mxu0 0.0
    %1921 = vmatpush.msra.mxu0 0.0
    %1922 = vmatpush.msra.mxu0 0.0
    %1923 = vmatpush.msra.mxu0 0.0
    %1924 = vmatpush.msra.mxu0 0.0
    %1925 = vmatpush.msra.mxu0 0.0
    %1926 = vmatpush.msra.mxu0 0.0
    %1927 = vmatpush.msra.mxu0 0.0
    %1928 = vmatpush.msra.mxu0 0.0
    %1929 = vmatpush.msra.mxu0 0.0
    %1930 = vmatpush.msra.mxu0 0.0
    %1931 = vmatpush.msra.mxu0 %v1913
    %1932 = vmatpush.msra.mxu0 %v1912
    %1933 = vmatmul.f32.gmra.mxu0 %v1915
    %v1934 = vpop.f32.mrf.mxu0
    %v1935 = vadd.f32 0.0, %v1934
    %1936 = vdwg.mxu0
    %v1938 = vsel %vm110, %v1907, 0
    %1940 = vmatpush.msra.mxu0 0.0
    %1941 = vmatpush.msra.mxu0 0.0
    %1942 = vmatpush.msra.mxu0 0.0
    %1943 = vmatpush.msra.mxu0 0.0
    %1944 = vmatpush.msra.mxu0 0.0
    %1945 = vmatpush.msra.mxu0 0.0
    %1946 = vmatpush.msra.mxu0 0.0
    %1947 = vmatpush.msra.mxu0 0.0
    %1948 = vmatpush.msra.mxu0 0.0
    %1949 = vmatpush.msra.mxu0 0.0
    %1950 = vmatpush.msra.mxu0 0.0
    %1951 = vmatpush.msra.mxu0 0.0
    %1952 = vmatpush.msra.mxu0 0.0
    %1953 = vmatpush.msra.mxu0 0.0
    %1954 = vmatpush.msra.mxu0 %v1909
    %1955 = vmatpush.msra.mxu0 %v1908
    %1956 = vmatmul.f32.gmra.mxu0 %v1938
    %v1957 = vpop.f32.mrf.mxu0
    %v1958 = vadd.f32 %v1935, %v1957
    %1959 = vdwg.mxu0
    %v1960 = vmul.f32 %v447, %v1905
    %s1961 = scalar_lea.vmem [#allocation2], 32
    %v1962 = vld [vmem:[%s1961] sm:$0xff]
    %v1963 = vld [vmem:[%s1961 + $0x8] sm:$0xff]
    %v1965 = vsel %vm110, %v1960, 0
    %1967 = vmatpush.msra.mxu0 0.0
    %1968 = vmatpush.msra.mxu0 0.0
    %1969 = vmatpush.msra.mxu0 0.0
    %1970 = vmatpush.msra.mxu0 0.0
    %1971 = vmatpush.msra.mxu0 0.0
    %1972 = vmatpush.msra.mxu0 0.0
    %1973 = vmatpush.msra.mxu0 0.0
    %1974 = vmatpush.msra.mxu0 0.0
    %1975 = vmatpush.msra.mxu0 0.0
    %1976 = vmatpush.msra.mxu0 0.0
    %1977 = vmatpush.msra.mxu0 0.0
    %1978 = vmatpush.msra.mxu0 0.0
    %1979 = vmatpush.msra.mxu0 0.0
    %1980 = vmatpush.msra.mxu0 0.0
    %1981 = vmatpush.msra.mxu0 %v1963
    %1982 = vmatpush.msra.mxu0 %v1962
    %1983 = vmatmul.f32.gmra.mxu0 %v1965
    %v1984 = vpop.f32.mrf.mxu0
    %v1985 = vadd.f32 0.0, %v1984
    %1986 = vdwg.mxu0
    %v1987 = vadd.f32 %v1958, %v1985
    %1988 = vrot.lane.b32.xlu0 %v1881, 48
    %v1989 = vpop.permute.xlu0 %1988
    %vm1991 = vcmask 392192
    %v1992 = vsel %vm1991, %v1987, %v1989
    %vm1993 = vcmask 523264
    %v1994 = vsel %vm1993, %v1992, 0.0
    %1995 = vst [vmem:[#allocation8] sm:$0xff] %v1994
    // Predicated region
    $region62: #{tpu_custom_call.1} parent=1 // pred_check
      _
    $region63: #{tpu_custom_call.1} parent=1 // pred_check_branch
      %1997 = sbr.rel (0) target = $region65
    $region64: #{tpu_custom_call.1} parent=1 // pred_region
      %1999 = vsyncadd [#allocation4], 0
      %s2001 = sshll.u32 [#allocation8], 4
      %s2002 = int_to_ptr.vmem [resolvable:$true] %s2001
      %s2003 = sshll.u32 %s12, 4
      %s2004 = int_to_ptr.hbm [resolvable:$true] %s2003
      %2006 = dma.vmem_to_hbm [thread:$0]  %s2002, 128, %s2004, [#allocation4]
    $region65: #{tpu_custom_call.1} parent=1 // pred_fallthru
      _
    // Predicated region
    $region66: #{tpu_custom_call.1} parent=1 // pred_check
      _
    $region67: #{tpu_custom_call.1} parent=1 // pred_check_branch
      %2008 = sbr.rel (0) target = $region69
    $region68: #{tpu_custom_call.1} parent=1 // pred_region
      %2010 = dma.done [#allocation4], 128
    $region69: #{tpu_custom_call.1} parent=1 // pred_fallthru
      _
    %2011 = vsyncpa [#allocation3], 1
    %2012 = vsyncpa [#allocation6], 1
    %2013 = vsyncpa [#allocation4], 1

</llo_original>
